<compile_context>
chip_gen: v5e
topology: v5e:2x2
jax: 0.10.0
libtpu: 0.0.40
codegen_flags: <defaults>
</compile_context>

<pallas_src>
import functools

import jax
import jax.numpy as jnp
from jax.experimental import pallas as pl
from jax.experimental.pallas import tpu as pltpu

# ---- synthetic config (mirrors args of the PyTorch module) -----------------
VOCAB_SIZE = 64
GLOVE_DIM = 32      # D
ENC_HID = 32        # H
OUTPUT_SIZE = 8     # O
BATCH = 2
SEQ = 8             # T
B_PAD = ((BATCH + 7) // 8) * 8   # pad batch to the sublane count


def lstm_pool_fc_kernel(x_ref, wih_ref, whh_ref, b_ref, wfc_ref, bfc_ref,
                        out_ref, *, seq_len, batch_pad):
    """Fused LSTM recurrence + running max-pool over time + final Linear.

    x_ref   : (T*Bp, D)  time-major inputs, batch padded to Bp
    wih_ref : (D, 4H)    pre-transposed input-to-hidden weights, gates [i,f,g,o]
    whh_ref : (4, H, H)  per-gate pre-transposed hidden-to-hidden weights
    b_ref   : (1, 4H)    b_ih + b_hh
    wfc_ref : (H, O)     pre-transposed fc_target weight
    bfc_ref : (1, O)     fc_target bias
    out_ref : (Bp, O)
    """
    T = seq_len
    Bp = batch_pad
    H = whh_ref.shape[-1]

    # Input projection for all timesteps in one MXU matmul; bias added once.
    # This is entirely off the serial recurrence critical path.
    gx_all = (jnp.dot(x_ref[...], wih_ref[...],
                      preferred_element_type=jnp.float32)
              + b_ref[...])                                   # (T*Bp, 4H)

    # Per-gate recurrent weights loaded once (live in vregs across the loop).
    whh_i = whh_ref[0]
    whh_f = whh_ref[1]
    whh_g = whh_ref[2]
    whh_o = whh_ref[3]

    h = jnp.zeros((Bp, H), jnp.float32)
    c = jnp.zeros((Bp, H), jnp.float32)
    mx = jnp.full((Bp, H), -jnp.inf, jnp.float32)

    # T is small and static: fully unrolled loop, state carried in registers.
    for t in range(T):
        r0 = t * Bp
        gx_t = gx_all[r0:r0 + Bp]                             # (Bp, 4H), static
        pre_i = gx_t[:, 0:H] + jnp.dot(
            h, whh_i, preferred_element_type=jnp.float32)
        pre_f = gx_t[:, H:2 * H] + jnp.dot(
            h, whh_f, preferred_element_type=jnp.float32)
        pre_g = gx_t[:, 2 * H:3 * H] + jnp.dot(
            h, whh_g, preferred_element_type=jnp.float32)
        pre_o = gx_t[:, 3 * H:4 * H] + jnp.dot(
            h, whh_o, preferred_element_type=jnp.float32)
        i_g = jax.nn.sigmoid(pre_i)
        f_g = jax.nn.sigmoid(pre_f)
        g_g = jnp.tanh(pre_g)
        o_g = jax.nn.sigmoid(pre_o)
        c = f_g * c + i_g * g_g
        h = o_g * jnp.tanh(c)
        mx = jnp.maximum(mx, h)               # AdaptiveMaxPool1d(1) running max

    out = (jnp.dot(mx, wfc_ref[...], preferred_element_type=jnp.float32)
           + bfc_ref[...])
    out_ref[...] = out.astype(out_ref.dtype)


def init_params(key):
    k_emb, k_wih, k_whh, k_bih, k_bhh, k_wfc = jax.random.split(key, 6)
    scale = 1.0 / jnp.sqrt(ENC_HID)
    emb_table = jax.random.normal(k_emb, (VOCAB_SIZE, GLOVE_DIM), jnp.float32) * 0.1
    w_ih = jax.random.uniform(k_wih, (4 * ENC_HID, GLOVE_DIM), jnp.float32,
                              -scale, scale)
    w_hh = jax.random.uniform(k_whh, (4 * ENC_HID, ENC_HID), jnp.float32,
                              -scale, scale)
    b_ih = jax.random.uniform(k_bih, (4 * ENC_HID,), jnp.float32, -scale, scale)
    b_hh = jax.random.uniform(k_bhh, (4 * ENC_HID,), jnp.float32, -scale, scale)
    # nn.init.xavier_normal_ on fc_target.weight
    xavier_std = jnp.sqrt(2.0 / (ENC_HID + OUTPUT_SIZE))
    w_fc = jax.random.normal(k_wfc, (OUTPUT_SIZE, ENC_HID), jnp.float32) * xavier_std
    b_fc = jnp.zeros((OUTPUT_SIZE,), jnp.float32)
    return dict(emb=emb_table, w_ih=w_ih, w_hh=w_hh, b_ih=b_ih, b_hh=b_hh,
                w_fc=w_fc, b_fc=b_fc)


@jax.jit
def generate_forward(token_ids, params):
    D, H, O = GLOVE_DIM, ENC_HID, OUTPUT_SIZE
    B, T = token_ids.shape

    # Embedding lookup (get_embedding.get_glove) -- gathered directly in
    # time-major order, so no activation transpose is needed.
    # TODO(synk): the host-side word2id string lookup / GloVe file load has no
    # Pallas equivalent; token ids + a random table stand in for it.
    x_tbd = jnp.take(params["emb"], token_ids.T, axis=0)        # (T, B, D)
    # Pad batch to the sublane count and flatten to a lane-aligned slab.
    x_tbd = jnp.pad(x_tbd, ((0, 0), (0, B_PAD - B), (0, 0)))
    x_flat = x_tbd.reshape(T * B_PAD, D)

    # One-time (trace-time) weight re-layouts: everything pre-transposed so the
    # kernel never transposes.
    wih_t = params["w_ih"].T                                        # (D, 4H)
    whh_stack = params["w_hh"].reshape(4, H, H).transpose(0, 2, 1)  # (4, H, H)
    b = (params["b_ih"] + params["b_hh"]).reshape(1, 4 * H)         # (1, 4H)
    wfc_t = params["w_fc"].T                                        # (H, O)
    bfc = params["b_fc"].reshape(1, O)                              # (1, O)

    vmem = pl.BlockSpec(memory_space=pltpu.MemorySpace.VMEM)
    kernel = functools.partial(lstm_pool_fc_kernel, seq_len=T, batch_pad=B_PAD)
    out_pad = pl.pallas_call(
        kernel,
        out_shape=jax.ShapeDtypeStruct((B_PAD, O), jnp.float32),
        in_specs=[vmem] * 6,
        out_specs=vmem,
    )(x_flat, wih_t, whh_stack, b, wfc_t, bfc)

    target = out_pad[:B]
    # Dropout is identity at inference time.
    return [target, None, None]


def _reference_forward(token_ids, params):
    """Pure-JAX reference for validation (same PyTorch LSTM semantics)."""
    emb = jnp.take(params["emb"], token_ids, axis=0)       # (B, T, D)
    H = ENC_HID
    w_ih_t = params["w_ih"].T
    w_hh_t = params["w_hh"].T
    b = params["b_ih"] + params["b_hh"]

    def cell(carry, x_t):
        h, c = carry
        gates = x_t @ w_ih_t + h @ w_hh_t + b
        i = jax.nn.sigmoid(gates[:, 0:H])
        f = jax.nn.sigmoid(gates[:, H:2 * H])
        g = jnp.tanh(gates[:, 2 * H:3 * H])
        o = jax.nn.sigmoid(gates[:, 3 * H:4 * H])
        c = f * c + i * g
        h = o * jnp.tanh(c)
        return (h, c), h

    h0 = jnp.zeros((BATCH, H), jnp.float32)
    c0 = jnp.zeros((BATCH, H), jnp.float32)
    _, hs = jax.lax.scan(cell, (h0, c0), jnp.transpose(emb, (1, 0, 2)))
    pooled = jnp.max(hs, axis=0)                           # (B, H)
    return pooled @ params["w_fc"].T + params["b_fc"]


if __name__ == "__main__":
    key = jax.random.PRNGKey(0)
    k_params, k_ids = jax.random.split(key)
    params = init_params(k_params)
    token_ids = jax.random.randint(k_ids, (BATCH, SEQ), 0, VOCAB_SIZE,
                                   dtype=jnp.int32)

    out = generate_forward(token_ids, params)
    target = jax.block_until_ready(out[0])

    ref = _reference_forward(token_ids, params)
    assert target.shape == (BATCH, OUTPUT_SIZE)
    assert jnp.allclose(target, ref, atol=1e-3, rtol=1e-3)
    print("KERNEL_OK")
</pallas_src>

<mosaic_0001>
module attributes {stable_mosaic.version = 11 : i64} {
  func.func @lstm_pool_fc_kernel(%arg0: memref<64x32xf32, #tpu.memory_space<vmem>>, %arg1: memref<32x128xf32, #tpu.memory_space<vmem>>, %arg2: memref<4x32x32xf32, #tpu.memory_space<vmem>>, %arg3: memref<1x128xf32, #tpu.memory_space<vmem>>, %arg4: memref<32x8xf32, #tpu.memory_space<vmem>>, %arg5: memref<1x8xf32, #tpu.memory_space<vmem>>, %arg6: memref<8x8xf32, #tpu.memory_space<vmem>>) attributes {dimension_semantics = [], scalar_prefetch = 0 : i64, scratch_operands = 0 : i64, tpu.core_type = #tpu.core_type<tc>} {
    %c0 = arith.constant 0 : index
    %c0_0 = arith.constant 0 : index
    %0 = vector.load %arg0[%c0, %c0_0] : memref<64x32xf32, #tpu.memory_space<vmem>>, vector<64x32xf32>
    %c0_1 = arith.constant 0 : index
    %c0_2 = arith.constant 0 : index
    %1 = vector.load %arg1[%c0_1, %c0_2] : memref<32x128xf32, #tpu.memory_space<vmem>>, vector<32x128xf32>
    %cst = arith.constant dense<0.000000e+00> : vector<64x128xf32>
    %2 = tpu.matmul %0, %1, %cst {dimension_numbers = #tpu.dot_dimension_numbers<[1], [0], [0], [1], [0, 0, 1, 1], [], []>} : vector<64x32xf32>, vector<32x128xf32>, vector<64x128xf32> -> vector<64x128xf32>
    %c0_3 = arith.constant 0 : index
    %c0_4 = arith.constant 0 : index
    %3 = vector.load %arg3[%c0_3, %c0_4] : memref<1x128xf32, #tpu.memory_space<vmem>>, vector<1x128xf32>
    %4 = vector.broadcast %3 : vector<1x128xf32> to vector<64x128xf32>
    %5 = arith.addf %2, %4 : vector<64x128xf32>
    %c0_5 = arith.constant 0 : index
    %c0_6 = arith.constant 0 : index
    %c0_7 = arith.constant 0 : index
    %6 = vector.load %arg2[%c0_5, %c0_6, %c0_7] : memref<4x32x32xf32, #tpu.memory_space<vmem>>, vector<1x32x32xf32>
    %7 = vector.shape_cast %6 : vector<1x32x32xf32> to vector<32x32xf32>
    %c1 = arith.constant 1 : index
    %c0_8 = arith.constant 0 : index
    %c0_9 = arith.constant 0 : index
    %8 = vector.load %arg2[%c1, %c0_8, %c0_9] : memref<4x32x32xf32, #tpu.memory_space<vmem>>, vector<1x32x32xf32>
    %9 = vector.shape_cast %8 : vector<1x32x32xf32> to vector<32x32xf32>
    %c2 = arith.constant 2 : index
    %c0_10 = arith.constant 0 : index
    %c0_11 = arith.constant 0 : index
    %10 = vector.load %arg2[%c2, %c0_10, %c0_11] : memref<4x32x32xf32, #tpu.memory_space<vmem>>, vector<1x32x32xf32>
    %11 = vector.shape_cast %10 : vector<1x32x32xf32> to vector<32x32xf32>
    %c3 = arith.constant 3 : index
    %c0_12 = arith.constant 0 : index
    %c0_13 = arith.constant 0 : index
    %12 = vector.load %arg2[%c3, %c0_12, %c0_13] : memref<4x32x32xf32, #tpu.memory_space<vmem>>, vector<1x32x32xf32>
    %13 = vector.shape_cast %12 : vector<1x32x32xf32> to vector<32x32xf32>
    %cst_14 = arith.constant 0.000000e+00 : f32
    %14 = vector.broadcast %cst_14 : f32 to vector<8x32xf32>
    %cst_15 = arith.constant 0.000000e+00 : f32
    %15 = vector.broadcast %cst_15 : f32 to vector<8x32xf32>
    %cst_16 = arith.constant 0xFF800000 : f32
    %16 = vector.broadcast %cst_16 : f32 to vector<8x32xf32>
    %17 = vector.extract_strided_slice %5 {offsets = [0, 0], sizes = [8, 128], strides = [1, 1]} : vector<64x128xf32> to vector<8x128xf32>
    %18 = vector.extract_strided_slice %17 {offsets = [0, 0], sizes = [8, 32], strides = [1, 1]} : vector<8x128xf32> to vector<8x32xf32>
    %cst_17 = arith.constant dense<0.000000e+00> : vector<8x32xf32>
    %19 = tpu.matmul %14, %7, %cst_17 {dimension_numbers = #tpu.dot_dimension_numbers<[1], [0], [0], [1], [0, 0, 1, 1], [], []>} : vector<8x32xf32>, vector<32x32xf32>, vector<8x32xf32> -> vector<8x32xf32>
    %20 = arith.addf %18, %19 : vector<8x32xf32>
    %21 = vector.extract_strided_slice %17 {offsets = [0, 32], sizes = [8, 32], strides = [1, 1]} : vector<8x128xf32> to vector<8x32xf32>
    %cst_18 = arith.constant dense<0.000000e+00> : vector<8x32xf32>
    %22 = tpu.matmul %14, %9, %cst_18 {dimension_numbers = #tpu.dot_dimension_numbers<[1], [0], [0], [1], [0, 0, 1, 1], [], []>} : vector<8x32xf32>, vector<32x32xf32>, vector<8x32xf32> -> vector<8x32xf32>
    %23 = arith.addf %21, %22 : vector<8x32xf32>
    %24 = vector.extract_strided_slice %17 {offsets = [0, 64], sizes = [8, 32], strides = [1, 1]} : vector<8x128xf32> to vector<8x32xf32>
    %cst_19 = arith.constant dense<0.000000e+00> : vector<8x32xf32>
    %25 = tpu.matmul %14, %11, %cst_19 {dimension_numbers = #tpu.dot_dimension_numbers<[1], [0], [0], [1], [0, 0, 1, 1], [], []>} : vector<8x32xf32>, vector<32x32xf32>, vector<8x32xf32> -> vector<8x32xf32>
    %26 = arith.addf %24, %25 : vector<8x32xf32>
    %27 = vector.extract_strided_slice %17 {offsets = [0, 96], sizes = [8, 32], strides = [1, 1]} : vector<8x128xf32> to vector<8x32xf32>
    %cst_20 = arith.constant dense<0.000000e+00> : vector<8x32xf32>
    %28 = tpu.matmul %14, %13, %cst_20 {dimension_numbers = #tpu.dot_dimension_numbers<[1], [0], [0], [1], [0, 0, 1, 1], [], []>} : vector<8x32xf32>, vector<32x32xf32>, vector<8x32xf32> -> vector<8x32xf32>
    %29 = arith.addf %27, %28 : vector<8x32xf32>
    %30 = arith.negf %20 : vector<8x32xf32>
    %31 = math.exp %30 : vector<8x32xf32>
    %cst_21 = arith.constant 1.000000e+00 : f32
    %32 = vector.broadcast %cst_21 : f32 to vector<8x32xf32>
    %33 = arith.addf %32, %31 : vector<8x32xf32>
    %34 = arith.divf %32, %33 : vector<8x32xf32>
    %35 = arith.negf %23 : vector<8x32xf32>
    %36 = math.exp %35 : vector<8x32xf32>
    %cst_22 = arith.constant 1.000000e+00 : f32
    %37 = vector.broadcast %cst_22 : f32 to vector<8x32xf32>
    %38 = arith.addf %37, %36 : vector<8x32xf32>
    %39 = arith.divf %37, %38 : vector<8x32xf32>
    %40 = math.tanh %26 : vector<8x32xf32>
    %41 = arith.negf %29 : vector<8x32xf32>
    %42 = math.exp %41 : vector<8x32xf32>
    %cst_23 = arith.constant 1.000000e+00 : f32
    %43 = vector.broadcast %cst_23 : f32 to vector<8x32xf32>
    %44 = arith.addf %43, %42 : vector<8x32xf32>
    %45 = arith.divf %43, %44 : vector<8x32xf32>
    %46 = arith.mulf %39, %15 : vector<8x32xf32>
    %47 = arith.mulf %34, %40 : vector<8x32xf32>
    %48 = arith.addf %46, %47 : vector<8x32xf32>
    %49 = math.tanh %48 : vector<8x32xf32>
    %50 = arith.mulf %45, %49 : vector<8x32xf32>
    %51 = arith.maximumf %16, %50 : vector<8x32xf32>
    %52 = vector.extract_strided_slice %5 {offsets = [8, 0], sizes = [8, 128], strides = [1, 1]} : vector<64x128xf32> to vector<8x128xf32>
    %53 = vector.extract_strided_slice %52 {offsets = [0, 0], sizes = [8, 32], strides = [1, 1]} : vector<8x128xf32> to vector<8x32xf32>
    %cst_24 = arith.constant dense<0.000000e+00> : vector<8x32xf32>
    %54 = tpu.matmul %50, %7, %cst_24 {dimension_numbers = #tpu.dot_dimension_numbers<[1], [0], [0], [1], [0, 0, 1, 1], [], []>} : vector<8x32xf32>, vector<32x32xf32>, vector<8x32xf32> -> vector<8x32xf32>
    %55 = arith.addf %53, %54 : vector<8x32xf32>
    %56 = vector.extract_strided_slice %52 {offsets = [0, 32], sizes = [8, 32], strides = [1, 1]} : vector<8x128xf32> to vector<8x32xf32>
    %cst_25 = arith.constant dense<0.000000e+00> : vector<8x32xf32>
    %57 = tpu.matmul %50, %9, %cst_25 {dimension_numbers = #tpu.dot_dimension_numbers<[1], [0], [0], [1], [0, 0, 1, 1], [], []>} : vector<8x32xf32>, vector<32x32xf32>, vector<8x32xf32> -> vector<8x32xf32>
    %58 = arith.addf %56, %57 : vector<8x32xf32>
    %59 = vector.extract_strided_slice %52 {offsets = [0, 64], sizes = [8, 32], strides = [1, 1]} : vector<8x128xf32> to vector<8x32xf32>
    %cst_26 = arith.constant dense<0.000000e+00> : vector<8x32xf32>
    %60 = tpu.matmul %50, %11, %cst_26 {dimension_numbers = #tpu.dot_dimension_numbers<[1], [0], [0], [1], [0, 0, 1, 1], [], []>} : vector<8x32xf32>, vector<32x32xf32>, vector<8x32xf32> -> vector<8x32xf32>
    %61 = arith.addf %59, %60 : vector<8x32xf32>
    %62 = vector.extract_strided_slice %52 {offsets = [0, 96], sizes = [8, 32], strides = [1, 1]} : vector<8x128xf32> to vector<8x32xf32>
    %cst_27 = arith.constant dense<0.000000e+00> : vector<8x32xf32>
    %63 = tpu.matmul %50, %13, %cst_27 {dimension_numbers = #tpu.dot_dimension_numbers<[1], [0], [0], [1], [0, 0, 1, 1], [], []>} : vector<8x32xf32>, vector<32x32xf32>, vector<8x32xf32> -> vector<8x32xf32>
    %64 = arith.addf %62, %63 : vector<8x32xf32>
    %65 = arith.negf %55 : vector<8x32xf32>
    %66 = math.exp %65 : vector<8x32xf32>
    %cst_28 = arith.constant 1.000000e+00 : f32
    %67 = vector.broadcast %cst_28 : f32 to vector<8x32xf32>
    %68 = arith.addf %67, %66 : vector<8x32xf32>
    %69 = arith.divf %67, %68 : vector<8x32xf32>
    %70 = arith.negf %58 : vector<8x32xf32>
    %71 = math.exp %70 : vector<8x32xf32>
    %cst_29 = arith.constant 1.000000e+00 : f32
    %72 = vector.broadcast %cst_29 : f32 to vector<8x32xf32>
    %73 = arith.addf %72, %71 : vector<8x32xf32>
    %74 = arith.divf %72, %73 : vector<8x32xf32>
    %75 = math.tanh %61 : vector<8x32xf32>
    %76 = arith.negf %64 : vector<8x32xf32>
    %77 = math.exp %76 : vector<8x32xf32>
    %cst_30 = arith.constant 1.000000e+00 : f32
    %78 = vector.broadcast %cst_30 : f32 to vector<8x32xf32>
    %79 = arith.addf %78, %77 : vector<8x32xf32>
    %80 = arith.divf %78, %79 : vector<8x32xf32>
    %81 = arith.mulf %74, %48 : vector<8x32xf32>
    %82 = arith.mulf %69, %75 : vector<8x32xf32>
    %83 = arith.addf %81, %82 : vector<8x32xf32>
    %84 = math.tanh %83 : vector<8x32xf32>
    %85 = arith.mulf %80, %84 : vector<8x32xf32>
    %86 = arith.maximumf %51, %85 : vector<8x32xf32>
    %87 = vector.extract_strided_slice %5 {offsets = [16, 0], sizes = [8, 128], strides = [1, 1]} : vector<64x128xf32> to vector<8x128xf32>
    %88 = vector.extract_strided_slice %87 {offsets = [0, 0], sizes = [8, 32], strides = [1, 1]} : vector<8x128xf32> to vector<8x32xf32>
    %cst_31 = arith.constant dense<0.000000e+00> : vector<8x32xf32>
    %89 = tpu.matmul %85, %7, %cst_31 {dimension_numbers = #tpu.dot_dimension_numbers<[1], [0], [0], [1], [0, 0, 1, 1], [], []>} : vector<8x32xf32>, vector<32x32xf32>, vector<8x32xf32> -> vector<8x32xf32>
    %90 = arith.addf %88, %89 : vector<8x32xf32>
    %91 = vector.extract_strided_slice %87 {offsets = [0, 32], sizes = [8, 32], strides = [1, 1]} : vector<8x128xf32> to vector<8x32xf32>
    %cst_32 = arith.constant dense<0.000000e+00> : vector<8x32xf32>
    %92 = tpu.matmul %85, %9, %cst_32 {dimension_numbers = #tpu.dot_dimension_numbers<[1], [0], [0], [1], [0, 0, 1, 1], [], []>} : vector<8x32xf32>, vector<32x32xf32>, vector<8x32xf32> -> vector<8x32xf32>
    %93 = arith.addf %91, %92 : vector<8x32xf32>
    %94 = vector.extract_strided_slice %87 {offsets = [0, 64], sizes = [8, 32], strides = [1, 1]} : vector<8x128xf32> to vector<8x32xf32>
    %cst_33 = arith.constant dense<0.000000e+00> : vector<8x32xf32>
    %95 = tpu.matmul %85, %11, %cst_33 {dimension_numbers = #tpu.dot_dimension_numbers<[1], [0], [0], [1], [0, 0, 1, 1], [], []>} : vector<8x32xf32>, vector<32x32xf32>, vector<8x32xf32> -> vector<8x32xf32>
    %96 = arith.addf %94, %95 : vector<8x32xf32>
    %97 = vector.extract_strided_slice %87 {offsets = [0, 96], sizes = [8, 32], strides = [1, 1]} : vector<8x128xf32> to vector<8x32xf32>
    %cst_34 = arith.constant dense<0.000000e+00> : vector<8x32xf32>
    %98 = tpu.matmul %85, %13, %cst_34 {dimension_numbers = #tpu.dot_dimension_numbers<[1], [0], [0], [1], [0, 0, 1, 1], [], []>} : vector<8x32xf32>, vector<32x32xf32>, vector<8x32xf32> -> vector<8x32xf32>
    %99 = arith.addf %97, %98 : vector<8x32xf32>
    %100 = arith.negf %90 : vector<8x32xf32>
    %101 = math.exp %100 : vector<8x32xf32>
    %cst_35 = arith.constant 1.000000e+00 : f32
    %102 = vector.broadcast %cst_35 : f32 to vector<8x32xf32>
    %103 = arith.addf %102, %101 : vector<8x32xf32>
    %104 = arith.divf %102, %103 : vector<8x32xf32>
    %105 = arith.negf %93 : vector<8x32xf32>
    %106 = math.exp %105 : vector<8x32xf32>
    %cst_36 = arith.constant 1.000000e+00 : f32
    %107 = vector.broadcast %cst_36 : f32 to vector<8x32xf32>
    %108 = arith.addf %107, %106 : vector<8x32xf32>
    %109 = arith.divf %107, %108 : vector<8x32xf32>
    %110 = math.tanh %96 : vector<8x32xf32>
    %111 = arith.negf %99 : vector<8x32xf32>
    %112 = math.exp %111 : vector<8x32xf32>
    %cst_37 = arith.constant 1.000000e+00 : f32
    %113 = vector.broadcast %cst_37 : f32 to vector<8x32xf32>
    %114 = arith.addf %113, %112 : vector<8x32xf32>
    %115 = arith.divf %113, %114 : vector<8x32xf32>
    %116 = arith.mulf %109, %83 : vector<8x32xf32>
    %117 = arith.mulf %104, %110 : vector<8x32xf32>
    %118 = arith.addf %116, %117 : vector<8x32xf32>
    %119 = math.tanh %118 : vector<8x32xf32>
    %120 = arith.mulf %115, %119 : vector<8x32xf32>
    %121 = arith.maximumf %86, %120 : vector<8x32xf32>
    %122 = vector.extract_strided_slice %5 {offsets = [24, 0], sizes = [8, 128], strides = [1, 1]} : vector<64x128xf32> to vector<8x128xf32>
    %123 = vector.extract_strided_slice %122 {offsets = [0, 0], sizes = [8, 32], strides = [1, 1]} : vector<8x128xf32> to vector<8x32xf32>
    %cst_38 = arith.constant dense<0.000000e+00> : vector<8x32xf32>
    %124 = tpu.matmul %120, %7, %cst_38 {dimension_numbers = #tpu.dot_dimension_numbers<[1], [0], [0], [1], [0, 0, 1, 1], [], []>} : vector<8x32xf32>, vector<32x32xf32>, vector<8x32xf32> -> vector<8x32xf32>
    %125 = arith.addf %123, %124 : vector<8x32xf32>
    %126 = vector.extract_strided_slice %122 {offsets = [0, 32], sizes = [8, 32], strides = [1, 1]} : vector<8x128xf32> to vector<8x32xf32>
    %cst_39 = arith.constant dense<0.000000e+00> : vector<8x32xf32>
    %127 = tpu.matmul %120, %9, %cst_39 {dimension_numbers = #tpu.dot_dimension_numbers<[1], [0], [0], [1], [0, 0, 1, 1], [], []>} : vector<8x32xf32>, vector<32x32xf32>, vector<8x32xf32> -> vector<8x32xf32>
    %128 = arith.addf %126, %127 : vector<8x32xf32>
    %129 = vector.extract_strided_slice %122 {offsets = [0, 64], sizes = [8, 32], strides = [1, 1]} : vector<8x128xf32> to vector<8x32xf32>
    %cst_40 = arith.constant dense<0.000000e+00> : vector<8x32xf32>
    %130 = tpu.matmul %120, %11, %cst_40 {dimension_numbers = #tpu.dot_dimension_numbers<[1], [0], [0], [1], [0, 0, 1, 1], [], []>} : vector<8x32xf32>, vector<32x32xf32>, vector<8x32xf32> -> vector<8x32xf32>
    %131 = arith.addf %129, %130 : vector<8x32xf32>
    %132 = vector.extract_strided_slice %122 {offsets = [0, 96], sizes = [8, 32], strides = [1, 1]} : vector<8x128xf32> to vector<8x32xf32>
    %cst_41 = arith.constant dense<0.000000e+00> : vector<8x32xf32>
    %133 = tpu.matmul %120, %13, %cst_41 {dimension_numbers = #tpu.dot_dimension_numbers<[1], [0], [0], [1], [0, 0, 1, 1], [], []>} : vector<8x32xf32>, vector<32x32xf32>, vector<8x32xf32> -> vector<8x32xf32>
    %134 = arith.addf %132, %133 : vector<8x32xf32>
    %135 = arith.negf %125 : vector<8x32xf32>
    %136 = math.exp %135 : vector<8x32xf32>
    %cst_42 = arith.constant 1.000000e+00 : f32
    %137 = vector.broadcast %cst_42 : f32 to vector<8x32xf32>
    %138 = arith.addf %137, %136 : vector<8x32xf32>
    %139 = arith.divf %137, %138 : vector<8x32xf32>
    %140 = arith.negf %128 : vector<8x32xf32>
    %141 = math.exp %140 : vector<8x32xf32>
    %cst_43 = arith.constant 1.000000e+00 : f32
    %142 = vector.broadcast %cst_43 : f32 to vector<8x32xf32>
    %143 = arith.addf %142, %141 : vector<8x32xf32>
    %144 = arith.divf %142, %143 : vector<8x32xf32>
    %145 = math.tanh %131 : vector<8x32xf32>
    %146 = arith.negf %134 : vector<8x32xf32>
    %147 = math.exp %146 : vector<8x32xf32>
    %cst_44 = arith.constant 1.000000e+00 : f32
    %148 = vector.broadcast %cst_44 : f32 to vector<8x32xf32>
    %149 = arith.addf %148, %147 : vector<8x32xf32>
    %150 = arith.divf %148, %149 : vector<8x32xf32>
    %151 = arith.mulf %144, %118 : vector<8x32xf32>
    %152 = arith.mulf %139, %145 : vector<8x32xf32>
    %153 = arith.addf %151, %152 : vector<8x32xf32>
    %154 = math.tanh %153 : vector<8x32xf32>
    %155 = arith.mulf %150, %154 : vector<8x32xf32>
    %156 = arith.maximumf %121, %155 : vector<8x32xf32>
    %157 = vector.extract_strided_slice %5 {offsets = [32, 0], sizes = [8, 128], strides = [1, 1]} : vector<64x128xf32> to vector<8x128xf32>
    %158 = vector.extract_strided_slice %157 {offsets = [0, 0], sizes = [8, 32], strides = [1, 1]} : vector<8x128xf32> to vector<8x32xf32>
    %cst_45 = arith.constant dense<0.000000e+00> : vector<8x32xf32>
    %159 = tpu.matmul %155, %7, %cst_45 {dimension_numbers = #tpu.dot_dimension_numbers<[1], [0], [0], [1], [0, 0, 1, 1], [], []>} : vector<8x32xf32>, vector<32x32xf32>, vector<8x32xf32> -> vector<8x32xf32>
    %160 = arith.addf %158, %159 : vector<8x32xf32>
    %161 = vector.extract_strided_slice %157 {offsets = [0, 32], sizes = [8, 32], strides = [1, 1]} : vector<8x128xf32> to vector<8x32xf32>
    %cst_46 = arith.constant dense<0.000000e+00> : vector<8x32xf32>
    %162 = tpu.matmul %155, %9, %cst_46 {dimension_numbers = #tpu.dot_dimension_numbers<[1], [0], [0], [1], [0, 0, 1, 1], [], []>} : vector<8x32xf32>, vector<32x32xf32>, vector<8x32xf32> -> vector<8x32xf32>
    %163 = arith.addf %161, %162 : vector<8x32xf32>
    %164 = vector.extract_strided_slice %157 {offsets = [0, 64], sizes = [8, 32], strides = [1, 1]} : vector<8x128xf32> to vector<8x32xf32>
    %cst_47 = arith.constant dense<0.000000e+00> : vector<8x32xf32>
    %165 = tpu.matmul %155, %11, %cst_47 {dimension_numbers = #tpu.dot_dimension_numbers<[1], [0], [0], [1], [0, 0, 1, 1], [], []>} : vector<8x32xf32>, vector<32x32xf32>, vector<8x32xf32> -> vector<8x32xf32>
    %166 = arith.addf %164, %165 : vector<8x32xf32>
    %167 = vector.extract_strided_slice %157 {offsets = [0, 96], sizes = [8, 32], strides = [1, 1]} : vector<8x128xf32> to vector<8x32xf32>
    %cst_48 = arith.constant dense<0.000000e+00> : vector<8x32xf32>
    %168 = tpu.matmul %155, %13, %cst_48 {dimension_numbers = #tpu.dot_dimension_numbers<[1], [0], [0], [1], [0, 0, 1, 1], [], []>} : vector<8x32xf32>, vector<32x32xf32>, vector<8x32xf32> -> vector<8x32xf32>
    %169 = arith.addf %167, %168 : vector<8x32xf32>
    %170 = arith.negf %160 : vector<8x32xf32>
    %171 = math.exp %170 : vector<8x32xf32>
    %cst_49 = arith.constant 1.000000e+00 : f32
    %172 = vector.broadcast %cst_49 : f32 to vector<8x32xf32>
    %173 = arith.addf %172, %171 : vector<8x32xf32>
    %174 = arith.divf %172, %173 : vector<8x32xf32>
    %175 = arith.negf %163 : vector<8x32xf32>
    %176 = math.exp %175 : vector<8x32xf32>
    %cst_50 = arith.constant 1.000000e+00 : f32
    %177 = vector.broadcast %cst_50 : f32 to vector<8x32xf32>
    %178 = arith.addf %177, %176 : vector<8x32xf32>
    %179 = arith.divf %177, %178 : vector<8x32xf32>
    %180 = math.tanh %166 : vector<8x32xf32>
    %181 = arith.negf %169 : vector<8x32xf32>
    %182 = math.exp %181 : vector<8x32xf32>
    %cst_51 = arith.constant 1.000000e+00 : f32
    %183 = vector.broadcast %cst_51 : f32 to vector<8x32xf32>
    %184 = arith.addf %183, %182 : vector<8x32xf32>
    %185 = arith.divf %183, %184 : vector<8x32xf32>
    %186 = arith.mulf %179, %153 : vector<8x32xf32>
    %187 = arith.mulf %174, %180 : vector<8x32xf32>
    %188 = arith.addf %186, %187 : vector<8x32xf32>
    %189 = math.tanh %188 : vector<8x32xf32>
    %190 = arith.mulf %185, %189 : vector<8x32xf32>
    %191 = arith.maximumf %156, %190 : vector<8x32xf32>
    %192 = vector.extract_strided_slice %5 {offsets = [40, 0], sizes = [8, 128], strides = [1, 1]} : vector<64x128xf32> to vector<8x128xf32>
    %193 = vector.extract_strided_slice %192 {offsets = [0, 0], sizes = [8, 32], strides = [1, 1]} : vector<8x128xf32> to vector<8x32xf32>
    %cst_52 = arith.constant dense<0.000000e+00> : vector<8x32xf32>
    %194 = tpu.matmul %190, %7, %cst_52 {dimension_numbers = #tpu.dot_dimension_numbers<[1], [0], [0], [1], [0, 0, 1, 1], [], []>} : vector<8x32xf32>, vector<32x32xf32>, vector<8x32xf32> -> vector<8x32xf32>
    %195 = arith.addf %193, %194 : vector<8x32xf32>
    %196 = vector.extract_strided_slice %192 {offsets = [0, 32], sizes = [8, 32], strides = [1, 1]} : vector<8x128xf32> to vector<8x32xf32>
    %cst_53 = arith.constant dense<0.000000e+00> : vector<8x32xf32>
    %197 = tpu.matmul %190, %9, %cst_53 {dimension_numbers = #tpu.dot_dimension_numbers<[1], [0], [0], [1], [0, 0, 1, 1], [], []>} : vector<8x32xf32>, vector<32x32xf32>, vector<8x32xf32> -> vector<8x32xf32>
    %198 = arith.addf %196, %197 : vector<8x32xf32>
    %199 = vector.extract_strided_slice %192 {offsets = [0, 64], sizes = [8, 32], strides = [1, 1]} : vector<8x128xf32> to vector<8x32xf32>
    %cst_54 = arith.constant dense<0.000000e+00> : vector<8x32xf32>
    %200 = tpu.matmul %190, %11, %cst_54 {dimension_numbers = #tpu.dot_dimension_numbers<[1], [0], [0], [1], [0, 0, 1, 1], [], []>} : vector<8x32xf32>, vector<32x32xf32>, vector<8x32xf32> -> vector<8x32xf32>
    %201 = arith.addf %199, %200 : vector<8x32xf32>
    %202 = vector.extract_strided_slice %192 {offsets = [0, 96], sizes = [8, 32], strides = [1, 1]} : vector<8x128xf32> to vector<8x32xf32>
    %cst_55 = arith.constant dense<0.000000e+00> : vector<8x32xf32>
    %203 = tpu.matmul %190, %13, %cst_55 {dimension_numbers = #tpu.dot_dimension_numbers<[1], [0], [0], [1], [0, 0, 1, 1], [], []>} : vector<8x32xf32>, vector<32x32xf32>, vector<8x32xf32> -> vector<8x32xf32>
    %204 = arith.addf %202, %203 : vector<8x32xf32>
    %205 = arith.negf %195 : vector<8x32xf32>
    %206 = math.exp %205 : vector<8x32xf32>
    %cst_56 = arith.constant 1.000000e+00 : f32
    %207 = vector.broadcast %cst_56 : f32 to vector<8x32xf32>
    %208 = arith.addf %207, %206 : vector<8x32xf32>
    %209 = arith.divf %207, %208 : vector<8x32xf32>
    %210 = arith.negf %198 : vector<8x32xf32>
    %211 = math.exp %210 : vector<8x32xf32>
    %cst_57 = arith.constant 1.000000e+00 : f32
    %212 = vector.broadcast %cst_57 : f32 to vector<8x32xf32>
    %213 = arith.addf %212, %211 : vector<8x32xf32>
    %214 = arith.divf %212, %213 : vector<8x32xf32>
    %215 = math.tanh %201 : vector<8x32xf32>
    %216 = arith.negf %204 : vector<8x32xf32>
    %217 = math.exp %216 : vector<8x32xf32>
    %cst_58 = arith.constant 1.000000e+00 : f32
    %218 = vector.broadcast %cst_58 : f32 to vector<8x32xf32>
    %219 = arith.addf %218, %217 : vector<8x32xf32>
    %220 = arith.divf %218, %219 : vector<8x32xf32>
    %221 = arith.mulf %214, %188 : vector<8x32xf32>
    %222 = arith.mulf %209, %215 : vector<8x32xf32>
    %223 = arith.addf %221, %222 : vector<8x32xf32>
    %224 = math.tanh %223 : vector<8x32xf32>
    %225 = arith.mulf %220, %224 : vector<8x32xf32>
    %226 = arith.maximumf %191, %225 : vector<8x32xf32>
    %227 = vector.extract_strided_slice %5 {offsets = [48, 0], sizes = [8, 128], strides = [1, 1]} : vector<64x128xf32> to vector<8x128xf32>
    %228 = vector.extract_strided_slice %227 {offsets = [0, 0], sizes = [8, 32], strides = [1, 1]} : vector<8x128xf32> to vector<8x32xf32>
    %cst_59 = arith.constant dense<0.000000e+00> : vector<8x32xf32>
    %229 = tpu.matmul %225, %7, %cst_59 {dimension_numbers = #tpu.dot_dimension_numbers<[1], [0], [0], [1], [0, 0, 1, 1], [], []>} : vector<8x32xf32>, vector<32x32xf32>, vector<8x32xf32> -> vector<8x32xf32>
    %230 = arith.addf %228, %229 : vector<8x32xf32>
    %231 = vector.extract_strided_slice %227 {offsets = [0, 32], sizes = [8, 32], strides = [1, 1]} : vector<8x128xf32> to vector<8x32xf32>
    %cst_60 = arith.constant dense<0.000000e+00> : vector<8x32xf32>
    %232 = tpu.matmul %225, %9, %cst_60 {dimension_numbers = #tpu.dot_dimension_numbers<[1], [0], [0], [1], [0, 0, 1, 1], [], []>} : vector<8x32xf32>, vector<32x32xf32>, vector<8x32xf32> -> vector<8x32xf32>
    %233 = arith.addf %231, %232 : vector<8x32xf32>
    %234 = vector.extract_strided_slice %227 {offsets = [0, 64], sizes = [8, 32], strides = [1, 1]} : vector<8x128xf32> to vector<8x32xf32>
    %cst_61 = arith.constant dense<0.000000e+00> : vector<8x32xf32>
    %235 = tpu.matmul %225, %11, %cst_61 {dimension_numbers = #tpu.dot_dimension_numbers<[1], [0], [0], [1], [0, 0, 1, 1], [], []>} : vector<8x32xf32>, vector<32x32xf32>, vector<8x32xf32> -> vector<8x32xf32>
    %236 = arith.addf %234, %235 : vector<8x32xf32>
    %237 = vector.extract_strided_slice %227 {offsets = [0, 96], sizes = [8, 32], strides = [1, 1]} : vector<8x128xf32> to vector<8x32xf32>
    %cst_62 = arith.constant dense<0.000000e+00> : vector<8x32xf32>
    %238 = tpu.matmul %225, %13, %cst_62 {dimension_numbers = #tpu.dot_dimension_numbers<[1], [0], [0], [1], [0, 0, 1, 1], [], []>} : vector<8x32xf32>, vector<32x32xf32>, vector<8x32xf32> -> vector<8x32xf32>
    %239 = arith.addf %237, %238 : vector<8x32xf32>
    %240 = arith.negf %230 : vector<8x32xf32>
    %241 = math.exp %240 : vector<8x32xf32>
    %cst_63 = arith.constant 1.000000e+00 : f32
    %242 = vector.broadcast %cst_63 : f32 to vector<8x32xf32>
    %243 = arith.addf %242, %241 : vector<8x32xf32>
    %244 = arith.divf %242, %243 : vector<8x32xf32>
    %245 = arith.negf %233 : vector<8x32xf32>
    %246 = math.exp %245 : vector<8x32xf32>
    %cst_64 = arith.constant 1.000000e+00 : f32
    %247 = vector.broadcast %cst_64 : f32 to vector<8x32xf32>
    %248 = arith.addf %247, %246 : vector<8x32xf32>
    %249 = arith.divf %247, %248 : vector<8x32xf32>
    %250 = math.tanh %236 : vector<8x32xf32>
    %251 = arith.negf %239 : vector<8x32xf32>
    %252 = math.exp %251 : vector<8x32xf32>
    %cst_65 = arith.constant 1.000000e+00 : f32
    %253 = vector.broadcast %cst_65 : f32 to vector<8x32xf32>
    %254 = arith.addf %253, %252 : vector<8x32xf32>
    %255 = arith.divf %253, %254 : vector<8x32xf32>
    %256 = arith.mulf %249, %223 : vector<8x32xf32>
    %257 = arith.mulf %244, %250 : vector<8x32xf32>
    %258 = arith.addf %256, %257 : vector<8x32xf32>
    %259 = math.tanh %258 : vector<8x32xf32>
    %260 = arith.mulf %255, %259 : vector<8x32xf32>
    %261 = arith.maximumf %226, %260 : vector<8x32xf32>
    %262 = vector.extract_strided_slice %5 {offsets = [56, 0], sizes = [8, 128], strides = [1, 1]} : vector<64x128xf32> to vector<8x128xf32>
    %263 = vector.extract_strided_slice %262 {offsets = [0, 0], sizes = [8, 32], strides = [1, 1]} : vector<8x128xf32> to vector<8x32xf32>
    %cst_66 = arith.constant dense<0.000000e+00> : vector<8x32xf32>
    %264 = tpu.matmul %260, %7, %cst_66 {dimension_numbers = #tpu.dot_dimension_numbers<[1], [0], [0], [1], [0, 0, 1, 1], [], []>} : vector<8x32xf32>, vector<32x32xf32>, vector<8x32xf32> -> vector<8x32xf32>
    %265 = arith.addf %263, %264 : vector<8x32xf32>
    %266 = vector.extract_strided_slice %262 {offsets = [0, 32], sizes = [8, 32], strides = [1, 1]} : vector<8x128xf32> to vector<8x32xf32>
    %cst_67 = arith.constant dense<0.000000e+00> : vector<8x32xf32>
    %267 = tpu.matmul %260, %9, %cst_67 {dimension_numbers = #tpu.dot_dimension_numbers<[1], [0], [0], [1], [0, 0, 1, 1], [], []>} : vector<8x32xf32>, vector<32x32xf32>, vector<8x32xf32> -> vector<8x32xf32>
    %268 = arith.addf %266, %267 : vector<8x32xf32>
    %269 = vector.extract_strided_slice %262 {offsets = [0, 64], sizes = [8, 32], strides = [1, 1]} : vector<8x128xf32> to vector<8x32xf32>
    %cst_68 = arith.constant dense<0.000000e+00> : vector<8x32xf32>
    %270 = tpu.matmul %260, %11, %cst_68 {dimension_numbers = #tpu.dot_dimension_numbers<[1], [0], [0], [1], [0, 0, 1, 1], [], []>} : vector<8x32xf32>, vector<32x32xf32>, vector<8x32xf32> -> vector<8x32xf32>
    %271 = arith.addf %269, %270 : vector<8x32xf32>
    %272 = vector.extract_strided_slice %262 {offsets = [0, 96], sizes = [8, 32], strides = [1, 1]} : vector<8x128xf32> to vector<8x32xf32>
    %cst_69 = arith.constant dense<0.000000e+00> : vector<8x32xf32>
    %273 = tpu.matmul %260, %13, %cst_69 {dimension_numbers = #tpu.dot_dimension_numbers<[1], [0], [0], [1], [0, 0, 1, 1], [], []>} : vector<8x32xf32>, vector<32x32xf32>, vector<8x32xf32> -> vector<8x32xf32>
    %274 = arith.addf %272, %273 : vector<8x32xf32>
    %275 = arith.negf %265 : vector<8x32xf32>
    %276 = math.exp %275 : vector<8x32xf32>
    %cst_70 = arith.constant 1.000000e+00 : f32
    %277 = vector.broadcast %cst_70 : f32 to vector<8x32xf32>
    %278 = arith.addf %277, %276 : vector<8x32xf32>
    %279 = arith.divf %277, %278 : vector<8x32xf32>
    %280 = arith.negf %268 : vector<8x32xf32>
    %281 = math.exp %280 : vector<8x32xf32>
    %cst_71 = arith.constant 1.000000e+00 : f32
    %282 = vector.broadcast %cst_71 : f32 to vector<8x32xf32>
    %283 = arith.addf %282, %281 : vector<8x32xf32>
    %284 = arith.divf %282, %283 : vector<8x32xf32>
    %285 = math.tanh %271 : vector<8x32xf32>
    %286 = arith.negf %274 : vector<8x32xf32>
    %287 = math.exp %286 : vector<8x32xf32>
    %cst_72 = arith.constant 1.000000e+00 : f32
    %288 = vector.broadcast %cst_72 : f32 to vector<8x32xf32>
    %289 = arith.addf %288, %287 : vector<8x32xf32>
    %290 = arith.divf %288, %289 : vector<8x32xf32>
    %291 = arith.mulf %284, %258 : vector<8x32xf32>
    %292 = arith.mulf %279, %285 : vector<8x32xf32>
    %293 = arith.addf %291, %292 : vector<8x32xf32>
    %294 = math.tanh %293 : vector<8x32xf32>
    %295 = arith.mulf %290, %294 : vector<8x32xf32>
    %296 = arith.maximumf %261, %295 : vector<8x32xf32>
    %c0_73 = arith.constant 0 : index
    %c0_74 = arith.constant 0 : index
    %297 = vector.load %arg4[%c0_73, %c0_74] : memref<32x8xf32, #tpu.memory_space<vmem>>, vector<32x8xf32>
    %cst_75 = arith.constant dense<0.000000e+00> : vector<8x8xf32>
    %298 = tpu.matmul %296, %297, %cst_75 {dimension_numbers = #tpu.dot_dimension_numbers<[1], [0], [0], [1], [0, 0, 1, 1], [], []>} : vector<8x32xf32>, vector<32x8xf32>, vector<8x8xf32> -> vector<8x8xf32>
    %c0_76 = arith.constant 0 : index
    %c0_77 = arith.constant 0 : index
    %299 = vector.load %arg5[%c0_76, %c0_77] : memref<1x8xf32, #tpu.memory_space<vmem>>, vector<1x8xf32>
    %300 = vector.broadcast %299 : vector<1x8xf32> to vector<8x8xf32>
    %301 = arith.addf %298, %300 : vector<8x8xf32>
    %c0_78 = arith.constant 0 : index
    %c0_79 = arith.constant 0 : index
    %302 = vector.load %arg6[%c0_78, %c0_79] : memref<8x8xf32, #tpu.memory_space<vmem>>, vector<8x8xf32>
    tpu.vector_store %arg6[%c0_78, %c0_79], %301 {strides = array<i32>} : memref<8x8xf32, #tpu.memory_space<vmem>>, vector<8x8xf32>,
    return
  }
}

</mosaic_0001>

<llo_original>
// kernel: generate_forward.1
$region0: #{generate_forward.1}
  #allocation0 [shape = 'u32[]', space=smem, size = 0x4, offset = 0x4, fixed_abs, tag = 'smem constant byte address 0x4 - core index']
  #allocation1 [shape = 'u32[72,128]{1,0:T(1,128)}', space=vmem, size = 0x9000, scoped, tag = 'internal scratch']
  %s0 = inlined_call_operand.vmem [shape: f32[64,32], index: 0, kind: input, shape index: {}]
  %s1 = inlined_call_operand.vmem [shape: f32[32,128], index: 1, kind: input, shape index: {}]
  %s2 = inlined_call_operand.vmem [shape: f32[4,32,32], index: 2, kind: input, shape index: {}]
  %s3 = inlined_call_operand.vmem [shape: f32[1,128], index: 3, kind: input, shape index: {}]
  %s4 = inlined_call_operand.vmem [shape: f32[32,8], index: 4, kind: input, shape index: {}]
  %s5 = inlined_call_operand.vmem [shape: f32[1,8], index: 5, kind: input, shape index: {}]
  %s6 = inlined_call_operand.vmem [shape: f32[8,8], index: 6, kind: output, shape index: {}]
  %s7 = sld [smem:[#allocation0]]
  $region34: #{generate_forward.1} parent=0
    _
  %s9 = ssub.s32 1, %s7
  %s10 = scalar_select 0, %s9, %s7
  // Predicated region
  $region2: #{generate_forward.1} parent=0 // pred_check
    _
  $region3: #{generate_forward.1} parent=0 // pred_check_branch
    %12 = sbr.rel (0) target = $region5
  $region4: #{generate_forward.1} parent=0 // pred_region
    _
  $region5: #{generate_forward.1} parent=0 // pred_fallthru
    _
  // Predicated region
  $region6: #{generate_forward.1} parent=0 // pred_check
    _
  $region7: #{generate_forward.1} parent=0 // pred_check_branch
    %14 = sbr.rel (0) target = $region9
  $region8: #{generate_forward.1} parent=0 // pred_region
    _
  $region9: #{generate_forward.1} parent=0 // pred_fallthru
    _
  // Predicated region
  $region10: #{generate_forward.1} parent=0 // pred_check
    _
  $region11: #{generate_forward.1} parent=0 // pred_check_branch
    %16 = sbr.rel (0) target = $region13
  $region12: #{generate_forward.1} parent=0 // pred_region
    _
  $region13: #{generate_forward.1} parent=0 // pred_fallthru
    _
  // Predicated region
  $region14: #{generate_forward.1} parent=0 // pred_check
    _
  $region15: #{generate_forward.1} parent=0 // pred_check_branch
    %18 = sbr.rel (0) target = $region17
  $region16: #{generate_forward.1} parent=0 // pred_region
    _
  $region17: #{generate_forward.1} parent=0 // pred_fallthru
    _
  // Predicated region
  $region18: #{generate_forward.1} parent=0 // pred_check
    _
  $region19: #{generate_forward.1} parent=0 // pred_check_branch
    %20 = sbr.rel (0) target = $region21
  $region20: #{generate_forward.1} parent=0 // pred_region
    _
  $region21: #{generate_forward.1} parent=0 // pred_fallthru
    _
  // Predicated region
  $region22: #{generate_forward.1} parent=0 // pred_check
    _
  $region23: #{generate_forward.1} parent=0 // pred_check_branch
    %22 = sbr.rel (0) target = $region25
  $region24: #{generate_forward.1} parent=0 // pred_region
    _
  $region25: #{generate_forward.1} parent=0 // pred_fallthru
    _
  %v23 = vld [vmem:[%s0] sm:$0xff]
  %v24 = vld [vmem:[%s0 + $0x8] sm:$0xff]
  %v25 = vld [vmem:[%s0 + $0x10] sm:$0xff]
  %v26 = vld [vmem:[%s0 + $0x18] sm:$0xff]
  %v27 = vld [vmem:[%s0 + $0x20] sm:$0xff]
  %v28 = vld [vmem:[%s0 + $0x28] sm:$0xff]
  %v29 = vld [vmem:[%s0 + $0x30] sm:$0xff]
  %v30 = vld [vmem:[%s0 + $0x38] sm:$0xff]
  %v31 = vld [vmem:[%s1] sm:$0xff]
  %v32 = vld [vmem:[%s1 + $0x8] sm:$0xff]
  %v33 = vld [vmem:[%s1 + $0x10] sm:$0xff]
  %v34 = vld [vmem:[%s1 + $0x18] sm:$0xff]
  %v35 = vld [vmem:[%s3] sm:$0x1]
  %v37 = vperm.slane %v35, 0
  %vm39 = vcmask 261120
  %v41 = vsel %vm39, %v23, 0
  %v44 = vsel %vm39, %v24, 0
  %v47 = vsel %vm39, %v25, 0
  %v50 = vsel %vm39, %v26, 0
  %v53 = vsel %vm39, %v27, 0
  %v56 = vsel %vm39, %v28, 0
  %v59 = vsel %vm39, %v29, 0
  %v62 = vsel %vm39, %v30, 0
  %64 = vmatpush.msra.mxu0 0.0
  %65 = vmatpush.msra.mxu0 0.0
  %66 = vmatpush.msra.mxu0 0.0
  %67 = vmatpush.msra.mxu0 0.0
  %68 = vmatpush.msra.mxu0 0.0
  %69 = vmatpush.msra.mxu0 0.0
  %70 = vmatpush.msra.mxu0 0.0
  %71 = vmatpush.msra.mxu0 0.0
  %72 = vmatpush.msra.mxu0 0.0
  %73 = vmatpush.msra.mxu0 0.0
  %74 = vmatpush.msra.mxu0 0.0
  %75 = vmatpush.msra.mxu0 0.0
  %76 = vmatpush.msra.mxu0 %v34
  %77 = vmatpush.msra.mxu0 %v33
  %78 = vmatpush.msra.mxu0 %v32
  %79 = vmatpush.msra.mxu0 %v31
  %80 = vmatmul.f32.gmra.mxu0 %v41
  %v81 = vpop.f32.mrf.mxu0
  %v82 = vadd.f32 %v37, %v81
  %83 = vmatmul.f32.gmra.mxu0 %v44
  %v84 = vpop.f32.mrf.mxu0
  %v85 = vadd.f32 %v37, %v84
  %86 = vmatmul.f32.gmra.mxu0 %v47
  %v87 = vpop.f32.mrf.mxu0
  %v88 = vadd.f32 %v37, %v87
  %89 = vmatmul.f32.gmra.mxu0 %v50
  %v90 = vpop.f32.mrf.mxu0
  %v91 = vadd.f32 %v37, %v90
  %92 = vmatmul.f32.gmra.mxu0 %v53
  %v93 = vpop.f32.mrf.mxu0
  %v94 = vadd.f32 %v37, %v93
  %95 = vmatmul.f32.gmra.mxu0 %v56
  %v96 = vpop.f32.mrf.mxu0
  %v97 = vadd.f32 %v37, %v96
  %98 = vmatmul.f32.gmra.mxu0 %v59
  %v99 = vpop.f32.mrf.mxu0
  %v100 = vadd.f32 %v37, %v99
  %101 = vmatmul.f32.gmra.mxu0 %v62
  %v102 = vpop.f32.mrf.mxu0
  %v103 = vadd.f32 %v37, %v102
  %104 = vdwg.mxu0
  %v105 = vld [vmem:[%s2] sm:$0xff]
  %v106 = vld [vmem:[%s2 + $0x8] sm:$0xff]
  %v107 = vld [vmem:[%s2 + $0x10] sm:$0xff]
  %v108 = vld [vmem:[%s2 + $0x18] sm:$0xff]
  %s109 = scalar_lea.vmem %s2, 32
  %v110 = vld [vmem:[%s109] sm:$0xff]
  %v111 = vld [vmem:[%s109 + $0x8] sm:$0xff]
  %v112 = vld [vmem:[%s109 + $0x10] sm:$0xff]
  %v113 = vld [vmem:[%s109 + $0x18] sm:$0xff]
  %s114 = scalar_lea.vmem %s2, 64
  %v115 = vld [vmem:[%s114] sm:$0xff]
  %v116 = vld [vmem:[%s114 + $0x8] sm:$0xff]
  %v117 = vld [vmem:[%s114 + $0x10] sm:$0xff]
  %v118 = vld [vmem:[%s114 + $0x18] sm:$0xff]
  %s119 = scalar_lea.vmem %s2, 96
  %v120 = vld [vmem:[%s119] sm:$0xff]
  %v121 = vld [vmem:[%s119 + $0x8] sm:$0xff]
  %v122 = vld [vmem:[%s119 + $0x10] sm:$0xff]
  %v123 = vld [vmem:[%s119 + $0x18] sm:$0xff]
  %v125 = vsel %vm39, 0.0, 0
  %127 = vmatpush.msra.mxu0 0.0
  %128 = vmatpush.msra.mxu0 0.0
  %129 = vmatpush.msra.mxu0 0.0
  %130 = vmatpush.msra.mxu0 0.0
  %131 = vmatpush.msra.mxu0 0.0
  %132 = vmatpush.msra.mxu0 0.0
  %133 = vmatpush.msra.mxu0 0.0
  %134 = vmatpush.msra.mxu0 0.0
  %135 = vmatpush.msra.mxu0 0.0
  %136 = vmatpush.msra.mxu0 0.0
  %137 = vmatpush.msra.mxu0 0.0
  %138 = vmatpush.msra.mxu0 0.0
  %139 = vmatpush.msra.mxu0 %v108
  %140 = vmatpush.msra.mxu0 %v107
  %141 = vmatpush.msra.mxu0 %v106
  %142 = vmatpush.msra.mxu0 %v105
  %143 = vmatmul.f32.gmra.mxu0 %v125
  %v144 = vpop.f32.mrf.mxu0
  %v145 = vadd.f32 0.0, %v144
  %146 = vdwg.mxu0
  %v147 = vadd.f32 %v82, %v145
  %148 = vmatpush.msra.mxu0 0.0
  %149 = vmatpush.msra.mxu0 0.0
  %150 = vmatpush.msra.mxu0 0.0
  %151 = vmatpush.msra.mxu0 0.0
  %152 = vmatpush.msra.mxu0 0.0
  %153 = vmatpush.msra.mxu0 0.0
  %154 = vmatpush.msra.mxu0 0.0
  %155 = vmatpush.msra.mxu0 0.0
  %156 = vmatpush.msra.mxu0 0.0
  %157 = vmatpush.msra.mxu0 0.0
  %158 = vmatpush.msra.mxu0 0.0
  %159 = vmatpush.msra.mxu0 0.0
  %160 = vmatpush.msra.mxu0 %v113
  %161 = vmatpush.msra.mxu0 %v112
  %162 = vmatpush.msra.mxu0 %v111
  %163 = vmatpush.msra.mxu0 %v110
  %164 = vmatmul.f32.gmra.mxu0 %v125
  %v165 = vpop.f32.mrf.mxu0
  %v166 = vadd.f32 0.0, %v165
  %167 = vdwg.mxu0
  %169 = vrot.lane.b32.xlu0 %v166, 32
  %v170 = vpop.permute.xlu0 %169
  %v172 = vadd.f32 %v82, %v170
  %173 = vmatpush.msra.mxu0 0.0
  %174 = vmatpush.msra.mxu0 0.0
  %175 = vmatpush.msra.mxu0 0.0
  %176 = vmatpush.msra.mxu0 0.0
  %177 = vmatpush.msra.mxu0 0.0
  %178 = vmatpush.msra.mxu0 0.0
  %179 = vmatpush.msra.mxu0 0.0
  %180 = vmatpush.msra.mxu0 0.0
  %181 = vmatpush.msra.mxu0 0.0
  %182 = vmatpush.msra.mxu0 0.0
  %183 = vmatpush.msra.mxu0 0.0
  %184 = vmatpush.msra.mxu0 0.0
  %185 = vmatpush.msra.mxu0 %v118
  %186 = vmatpush.msra.mxu0 %v117
  %187 = vmatpush.msra.mxu0 %v116
  %188 = vmatpush.msra.mxu0 %v115
  %189 = vmatmul.f32.gmra.mxu0 %v125
  %v190 = vpop.f32.mrf.mxu0
  %v191 = vadd.f32 0.0, %v190
  %192 = vdwg.mxu0
  %194 = vrot.lane.b32.xlu0 %v191, 64
  %v195 = vpop.permute.xlu0 %194
  %v197 = vadd.f32 %v82, %v195
  %198 = vmatpush.msra.mxu0 0.0
  %199 = vmatpush.msra.mxu0 0.0
  %200 = vmatpush.msra.mxu0 0.0
  %201 = vmatpush.msra.mxu0 0.0
  %202 = vmatpush.msra.mxu0 0.0
  %203 = vmatpush.msra.mxu0 0.0
  %204 = vmatpush.msra.mxu0 0.0
  %205 = vmatpush.msra.mxu0 0.0
  %206 = vmatpush.msra.mxu0 0.0
  %207 = vmatpush.msra.mxu0 0.0
  %208 = vmatpush.msra.mxu0 0.0
  %209 = vmatpush.msra.mxu0 0.0
  %210 = vmatpush.msra.mxu0 %v123
  %211 = vmatpush.msra.mxu0 %v122
  %212 = vmatpush.msra.mxu0 %v121
  %213 = vmatpush.msra.mxu0 %v120
  %214 = vmatmul.f32.gmra.mxu0 %v125
  %v215 = vpop.f32.mrf.mxu0
  %v216 = vadd.f32 0.0, %v215
  %217 = vdwg.mxu0
  %219 = vrot.lane.b32.xlu0 %v216, 96
  %v220 = vpop.permute.xlu0 %219
  %v222 = vadd.f32 %v82, %v220
  %v223 = vxor.u32 %v147, 2147483648
  %v224 = vmul.f32 %v223, 1.442695
  %v225 = vpow.pop %v224
  %v226 = vadd.f32 %v225, 1.0
  %v227 = vrcp.pop %v226
  %v228 = vmul.f32 %v226, %v227
  %v229 = vsub.f32 1.0, %v228
  %v230 = vmul.f32 %v227, %v229
  %v231 = vadd.f32 %v227, %v230
  %vm232 = vweird.f32 %v226
  %vm233 = vweird.f32 %v227
  %vm234 = vmor %vm232, %vm233
  %v235 = vsel %vm234, %v227, %v231
  %v236 = vand.u32 2147483647, %v226
  %vm237 = vcmp.eq.f32.partialorder %v236, 8.507059e+37
  %v238 = vand.u32 %v226, 2147483648
  %v239 = vor.u32 1.1754944e-38, %v238
  %v240 = vsel %vm237, %v239, %v235
  %v241 = vmul.f32 1.0, %v240
  %v242 = vxor.u32 %v172, 2147483648
  %v243 = vmul.f32 %v242, 1.442695
  %v244 = vpow.pop %v243
  %v245 = vadd.f32 %v244, 1.0
  %v246 = vrcp.pop %v245
  %v247 = vmul.f32 %v245, %v246
  %v248 = vsub.f32 1.0, %v247
  %v249 = vmul.f32 %v246, %v248
  %v250 = vadd.f32 %v246, %v249
  %vm251 = vweird.f32 %v245
  %vm252 = vweird.f32 %v246
  %vm253 = vmor %vm251, %vm252
  %v254 = vsel %vm253, %v246, %v250
  %v255 = vand.u32 2147483647, %v245
  %vm256 = vcmp.eq.f32.partialorder %v255, 8.507059e+37
  %v257 = vand.u32 %v245, 2147483648
  %v258 = vor.u32 1.1754944e-38, %v257
  %v259 = vsel %vm256, %v258, %v254
  %v260 = vmul.f32 1.0, %v259
  %v261 = vtanh.pop %v197
  %v262 = vxor.u32 %v222, 2147483648
  %v263 = vmul.f32 %v262, 1.442695
  %v264 = vpow.pop %v263
  %v265 = vadd.f32 %v264, 1.0
  %v266 = vrcp.pop %v265
  %v267 = vmul.f32 %v265, %v266
  %v268 = vsub.f32 1.0, %v267
  %v269 = vmul.f32 %v266, %v268
  %v270 = vadd.f32 %v266, %v269
  %vm271 = vweird.f32 %v265
  %vm272 = vweird.f32 %v266
  %vm273 = vmor %vm271, %vm272
  %v274 = vsel %vm273, %v266, %v270
  %v275 = vand.u32 2147483647, %v265
  %vm276 = vcmp.eq.f32.partialorder %v275, 8.507059e+37
  %v277 = vand.u32 %v265, 2147483648
  %v278 = vor.u32 1.1754944e-38, %v277
  %v279 = vsel %vm276, %v278, %v274
  %v280 = vmul.f32 1.0, %v279
  %v281 = vmul.f32 %v260, 0.0
  %283 = vrot.lane.b32.xlu0 %v261, 64
  %v284 = vpop.permute.xlu0 %283
  %v286 = vmul.f32 %v241, %v284
  %288 = vrot.lane.b32.xlu0 %v286, 32
  %v289 = vpop.permute.xlu0 %288
  %v291 = vadd.f32 %v281, %v289
  %v292 = vtanh.pop %v291
  %294 = vrot.lane.b32.xlu0 %v292, 64
  %v295 = vpop.permute.xlu0 %294
  %v297 = vmul.f32 %v280, %v295
  %299 = vrot.lane.b32.xlu0 %v297, 32
  %v300 = vpop.permute.xlu0 %299
  %v301 = vsel %vm39, %v300, 0
  %303 = vmatpush.msra.mxu0 0.0
  %304 = vmatpush.msra.mxu0 0.0
  %305 = vmatpush.msra.mxu0 0.0
  %306 = vmatpush.msra.mxu0 0.0
  %307 = vmatpush.msra.mxu0 0.0
  %308 = vmatpush.msra.mxu0 0.0
  %309 = vmatpush.msra.mxu0 0.0
  %310 = vmatpush.msra.mxu0 0.0
  %311 = vmatpush.msra.mxu0 0.0
  %312 = vmatpush.msra.mxu0 0.0
  %313 = vmatpush.msra.mxu0 0.0
  %314 = vmatpush.msra.mxu0 0.0
  %315 = vmatpush.msra.mxu0 %v108
  %316 = vmatpush.msra.mxu0 %v107
  %317 = vmatpush.msra.mxu0 %v106
  %318 = vmatpush.msra.mxu0 %v105
  %319 = vmatmul.f32.gmra.mxu0 %v301
  %v320 = vpop.f32.mrf.mxu0
  %v321 = vadd.f32 0.0, %v320
  %322 = vdwg.mxu0
  %v323 = vadd.f32 %v85, %v321
  %324 = vmatpush.msra.mxu0 0.0
  %325 = vmatpush.msra.mxu0 0.0
  %326 = vmatpush.msra.mxu0 0.0
  %327 = vmatpush.msra.mxu0 0.0
  %328 = vmatpush.msra.mxu0 0.0
  %329 = vmatpush.msra.mxu0 0.0
  %330 = vmatpush.msra.mxu0 0.0
  %331 = vmatpush.msra.mxu0 0.0
  %332 = vmatpush.msra.mxu0 0.0
  %333 = vmatpush.msra.mxu0 0.0
  %334 = vmatpush.msra.mxu0 0.0
  %335 = vmatpush.msra.mxu0 0.0
  %336 = vmatpush.msra.mxu0 %v113
  %337 = vmatpush.msra.mxu0 %v112
  %338 = vmatpush.msra.mxu0 %v111
  %339 = vmatpush.msra.mxu0 %v110
  %340 = vmatmul.f32.gmra.mxu0 %v301
  %v341 = vpop.f32.mrf.mxu0
  %v342 = vadd.f32 0.0, %v341
  %343 = vdwg.mxu0
  %345 = vrot.lane.b32.xlu0 %v342, 32
  %v346 = vpop.permute.xlu0 %345
  %v348 = vadd.f32 %v85, %v346
  %349 = vmatpush.msra.mxu0 0.0
  %350 = vmatpush.msra.mxu0 0.0
  %351 = vmatpush.msra.mxu0 0.0
  %352 = vmatpush.msra.mxu0 0.0
  %353 = vmatpush.msra.mxu0 0.0
  %354 = vmatpush.msra.mxu0 0.0
  %355 = vmatpush.msra.mxu0 0.0
  %356 = vmatpush.msra.mxu0 0.0
  %357 = vmatpush.msra.mxu0 0.0
  %358 = vmatpush.msra.mxu0 0.0
  %359 = vmatpush.msra.mxu0 0.0
  %360 = vmatpush.msra.mxu0 0.0
  %361 = vmatpush.msra.mxu0 %v118
  %362 = vmatpush.msra.mxu0 %v117
  %363 = vmatpush.msra.mxu0 %v116
  %364 = vmatpush.msra.mxu0 %v115
  %365 = vmatmul.f32.gmra.mxu0 %v301
  %v366 = vpop.f32.mrf.mxu0
  %v367 = vadd.f32 0.0, %v366
  %368 = vdwg.mxu0
  %370 = vrot.lane.b32.xlu0 %v367, 64
  %v371 = vpop.permute.xlu0 %370
  %v373 = vadd.f32 %v85, %v371
  %374 = vmatpush.msra.mxu0 0.0
  %375 = vmatpush.msra.mxu0 0.0
  %376 = vmatpush.msra.mxu0 0.0
  %377 = vmatpush.msra.mxu0 0.0
  %378 = vmatpush.msra.mxu0 0.0
  %379 = vmatpush.msra.mxu0 0.0
  %380 = vmatpush.msra.mxu0 0.0
  %381 = vmatpush.msra.mxu0 0.0
  %382 = vmatpush.msra.mxu0 0.0
  %383 = vmatpush.msra.mxu0 0.0
  %384 = vmatpush.msra.mxu0 0.0
  %385 = vmatpush.msra.mxu0 0.0
  %386 = vmatpush.msra.mxu0 %v123
  %387 = vmatpush.msra.mxu0 %v122
  %388 = vmatpush.msra.mxu0 %v121
  %389 = vmatpush.msra.mxu0 %v120
  %390 = vmatmul.f32.gmra.mxu0 %v301
  %v391 = vpop.f32.mrf.mxu0
  %v392 = vadd.f32 0.0, %v391
  %393 = vdwg.mxu0
  %395 = vrot.lane.b32.xlu0 %v392, 96
  %v396 = vpop.permute.xlu0 %395
  %v398 = vadd.f32 %v85, %v396
  %v399 = vxor.u32 %v323, 2147483648
  %v400 = vmul.f32 %v399, 1.442695
  %v401 = vpow.pop %v400
  %v402 = vadd.f32 %v401, 1.0
  %v403 = vrcp.pop %v402
  %v404 = vmul.f32 %v402, %v403
  %v405 = vsub.f32 1.0, %v404
  %v406 = vmul.f32 %v403, %v405
  %v407 = vadd.f32 %v403, %v406
  %vm408 = vweird.f32 %v402
  %vm409 = vweird.f32 %v403
  %vm410 = vmor %vm408, %vm409
  %v411 = vsel %vm410, %v403, %v407
  %v412 = vand.u32 2147483647, %v402
  %vm413 = vcmp.eq.f32.partialorder %v412, 8.507059e+37
  %v414 = vand.u32 %v402, 2147483648
  %v415 = vor.u32 1.1754944e-38, %v414
  %v416 = vsel %vm413, %v415, %v411
  %v417 = vmul.f32 1.0, %v416
  %v418 = vxor.u32 %v348, 2147483648
  %v419 = vmul.f32 %v418, 1.442695
  %v420 = vpow.pop %v419
  %v421 = vadd.f32 %v420, 1.0
  %v422 = vrcp.pop %v421
  %v423 = vmul.f32 %v421, %v422
  %v424 = vsub.f32 1.0, %v423
  %v425 = vmul.f32 %v422, %v424
  %v426 = vadd.f32 %v422, %v425
  %vm427 = vweird.f32 %v421
  %vm428 = vweird.f32 %v422
  %vm429 = vmor %vm427, %vm428
  %v430 = vsel %vm429, %v422, %v426
  %v431 = vand.u32 2147483647, %v421
  %vm432 = vcmp.eq.f32.partialorder %v431, 8.507059e+37
  %v433 = vand.u32 %v421, 2147483648
  %v434 = vor.u32 1.1754944e-38, %v433
  %v435 = vsel %vm432, %v434, %v430
  %v436 = vmul.f32 1.0, %v435
  %v437 = vtanh.pop %v373
  %v438 = vxor.u32 %v398, 2147483648
  %v439 = vmul.f32 %v438, 1.442695
  %v440 = vpow.pop %v439
  %v441 = vadd.f32 %v440, 1.0
  %v442 = vrcp.pop %v441
  %v443 = vmul.f32 %v441, %v442
  %v444 = vsub.f32 1.0, %v443
  %v445 = vmul.f32 %v442, %v444
  %v446 = vadd.f32 %v442, %v445
  %vm447 = vweird.f32 %v441
  %vm448 = vweird.f32 %v442
  %vm449 = vmor %vm447, %vm448
  %v450 = vsel %vm449, %v442, %v446
  %v451 = vand.u32 2147483647, %v441
  %vm452 = vcmp.eq.f32.partialorder %v451, 8.507059e+37
  %v453 = vand.u32 %v441, 2147483648
  %v454 = vor.u32 1.1754944e-38, %v453
  %v455 = vsel %vm452, %v454, %v450
  %v456 = vmul.f32 1.0, %v455
  %v457 = vmul.f32 %v436, %v291
  %459 = vrot.lane.b32.xlu0 %v437, 64
  %v460 = vpop.permute.xlu0 %459
  %v462 = vmul.f32 %v417, %v460
  %464 = vrot.lane.b32.xlu0 %v462, 32
  %v465 = vpop.permute.xlu0 %464
  %v467 = vadd.f32 %v457, %v465
  %v468 = vtanh.pop %v467
  %470 = vrot.lane.b32.xlu0 %v468, 64
  %v471 = vpop.permute.xlu0 %470
  %v473 = vmul.f32 %v456, %v471
  %v474 = vmax.f32 %v297, %v473
  %476 = vrot.lane.b32.xlu0 %v473, 32
  %v477 = vpop.permute.xlu0 %476
  %v478 = vsel %vm39, %v477, 0
  %480 = vmatpush.msra.mxu0 0.0
  %481 = vmatpush.msra.mxu0 0.0
  %482 = vmatpush.msra.mxu0 0.0
  %483 = vmatpush.msra.mxu0 0.0
  %484 = vmatpush.msra.mxu0 0.0
  %485 = vmatpush.msra.mxu0 0.0
  %486 = vmatpush.msra.mxu0 0.0
  %487 = vmatpush.msra.mxu0 0.0
  %488 = vmatpush.msra.mxu0 0.0
  %489 = vmatpush.msra.mxu0 0.0
  %490 = vmatpush.msra.mxu0 0.0
  %491 = vmatpush.msra.mxu0 0.0
  %492 = vmatpush.msra.mxu0 %v108
  %493 = vmatpush.msra.mxu0 %v107
  %494 = vmatpush.msra.mxu0 %v106
  %495 = vmatpush.msra.mxu0 %v105
  %496 = vmatmul.f32.gmra.mxu0 %v478
  %v497 = vpop.f32.mrf.mxu0
  %v498 = vadd.f32 0.0, %v497
  %499 = vdwg.mxu0
  %v500 = vadd.f32 %v88, %v498
  %501 = vmatpush.msra.mxu0 0.0
  %502 = vmatpush.msra.mxu0 0.0
  %503 = vmatpush.msra.mxu0 0.0
  %504 = vmatpush.msra.mxu0 0.0
  %505 = vmatpush.msra.mxu0 0.0
  %506 = vmatpush.msra.mxu0 0.0
  %507 = vmatpush.msra.mxu0 0.0
  %508 = vmatpush.msra.mxu0 0.0
  %509 = vmatpush.msra.mxu0 0.0
  %510 = vmatpush.msra.mxu0 0.0
  %511 = vmatpush.msra.mxu0 0.0
  %512 = vmatpush.msra.mxu0 0.0
  %513 = vmatpush.msra.mxu0 %v113
  %514 = vmatpush.msra.mxu0 %v112
  %515 = vmatpush.msra.mxu0 %v111
  %516 = vmatpush.msra.mxu0 %v110
  %517 = vmatmul.f32.gmra.mxu0 %v478
  %v518 = vpop.f32.mrf.mxu0
  %v519 = vadd.f32 0.0, %v518
  %520 = vdwg.mxu0
  %522 = vrot.lane.b32.xlu0 %v519, 32
  %v523 = vpop.permute.xlu0 %522
  %v525 = vadd.f32 %v88, %v523
  %526 = vmatpush.msra.mxu0 0.0
  %527 = vmatpush.msra.mxu0 0.0
  %528 = vmatpush.msra.mxu0 0.0
  %529 = vmatpush.msra.mxu0 0.0
  %530 = vmatpush.msra.mxu0 0.0
  %531 = vmatpush.msra.mxu0 0.0
  %532 = vmatpush.msra.mxu0 0.0
  %533 = vmatpush.msra.mxu0 0.0
  %534 = vmatpush.msra.mxu0 0.0
  %535 = vmatpush.msra.mxu0 0.0
  %536 = vmatpush.msra.mxu0 0.0
  %537 = vmatpush.msra.mxu0 0.0
  %538 = vmatpush.msra.mxu0 %v118
  %539 = vmatpush.msra.mxu0 %v117
  %540 = vmatpush.msra.mxu0 %v116
  %541 = vmatpush.msra.mxu0 %v115
  %542 = vmatmul.f32.gmra.mxu0 %v478
  %v543 = vpop.f32.mrf.mxu0
  %v544 = vadd.f32 0.0, %v543
  %545 = vdwg.mxu0
  %547 = vrot.lane.b32.xlu0 %v544, 64
  %v548 = vpop.permute.xlu0 %547
  %v550 = vadd.f32 %v88, %v548
  %551 = vmatpush.msra.mxu0 0.0
  %552 = vmatpush.msra.mxu0 0.0
  %553 = vmatpush.msra.mxu0 0.0
  %554 = vmatpush.msra.mxu0 0.0
  %555 = vmatpush.msra.mxu0 0.0
  %556 = vmatpush.msra.mxu0 0.0
  %557 = vmatpush.msra.mxu0 0.0
  %558 = vmatpush.msra.mxu0 0.0
  %559 = vmatpush.msra.mxu0 0.0
  %560 = vmatpush.msra.mxu0 0.0
  %561 = vmatpush.msra.mxu0 0.0
  %562 = vmatpush.msra.mxu0 0.0
  %563 = vmatpush.msra.mxu0 %v123
  %564 = vmatpush.msra.mxu0 %v122
  %565 = vmatpush.msra.mxu0 %v121
  %566 = vmatpush.msra.mxu0 %v120
  %567 = vmatmul.f32.gmra.mxu0 %v478
  %v568 = vpop.f32.mrf.mxu0
  %v569 = vadd.f32 0.0, %v568
  %570 = vdwg.mxu0
  %572 = vrot.lane.b32.xlu0 %v569, 96
  %v573 = vpop.permute.xlu0 %572
  %v575 = vadd.f32 %v88, %v573
  %v576 = vxor.u32 %v500, 2147483648
  %v577 = vmul.f32 %v576, 1.442695
  %v578 = vpow.pop %v577
  %v579 = vadd.f32 %v578, 1.0
  %v580 = vrcp.pop %v579
  %v581 = vmul.f32 %v579, %v580
  %v582 = vsub.f32 1.0, %v581
  %v583 = vmul.f32 %v580, %v582
  %v584 = vadd.f32 %v580, %v583
  %vm585 = vweird.f32 %v579
  %vm586 = vweird.f32 %v580
  %vm587 = vmor %vm585, %vm586
  %v588 = vsel %vm587, %v580, %v584
  %v589 = vand.u32 2147483647, %v579
  %vm590 = vcmp.eq.f32.partialorder %v589, 8.507059e+37
  %v591 = vand.u32 %v579, 2147483648
  %v592 = vor.u32 1.1754944e-38, %v591
  %v593 = vsel %vm590, %v592, %v588
  %v594 = vmul.f32 1.0, %v593
  %v595 = vxor.u32 %v525, 2147483648
  %v596 = vmul.f32 %v595, 1.442695
  %v597 = vpow.pop %v596
  %v598 = vadd.f32 %v597, 1.0
  %v599 = vrcp.pop %v598
  %v600 = vmul.f32 %v598, %v599
  %v601 = vsub.f32 1.0, %v600
  %v602 = vmul.f32 %v599, %v601
  %v603 = vadd.f32 %v599, %v602
  %vm604 = vweird.f32 %v598
  %vm605 = vweird.f32 %v599
  %vm606 = vmor %vm604, %vm605
  %v607 = vsel %vm606, %v599, %v603
  %v608 = vand.u32 2147483647, %v598
  %vm609 = vcmp.eq.f32.partialorder %v608, 8.507059e+37
  %v610 = vand.u32 %v598, 2147483648
  %v611 = vor.u32 1.1754944e-38, %v610
  %v612 = vsel %vm609, %v611, %v607
  %v613 = vmul.f32 1.0, %v612
  %v614 = vtanh.pop %v550
  %v615 = vxor.u32 %v575, 2147483648
  %v616 = vmul.f32 %v615, 1.442695
  %v617 = vpow.pop %v616
  %v618 = vadd.f32 %v617, 1.0
  %v619 = vrcp.pop %v618
  %v620 = vmul.f32 %v618, %v619
  %v621 = vsub.f32 1.0, %v620
  %v622 = vmul.f32 %v619, %v621
  %v623 = vadd.f32 %v619, %v622
  %vm624 = vweird.f32 %v618
  %vm625 = vweird.f32 %v619
  %vm626 = vmor %vm624, %vm625
  %v627 = vsel %vm626, %v619, %v623
  %v628 = vand.u32 2147483647, %v618
  %vm629 = vcmp.eq.f32.partialorder %v628, 8.507059e+37
  %v630 = vand.u32 %v618, 2147483648
  %v631 = vor.u32 1.1754944e-38, %v630
  %v632 = vsel %vm629, %v631, %v627
  %v633 = vmul.f32 1.0, %v632
  %v634 = vmul.f32 %v613, %v467
  %636 = vrot.lane.b32.xlu0 %v614, 64
  %v637 = vpop.permute.xlu0 %636
  %v639 = vmul.f32 %v594, %v637
  %641 = vrot.lane.b32.xlu0 %v639, 32
  %v642 = vpop.permute.xlu0 %641
  %v644 = vadd.f32 %v634, %v642
  %v645 = vtanh.pop %v644
  %647 = vrot.lane.b32.xlu0 %v645, 64
  %v648 = vpop.permute.xlu0 %647
  %v650 = vmul.f32 %v633, %v648
  %v651 = vmax.f32 %v474, %v650
  %653 = vrot.lane.b32.xlu0 %v650, 32
  %v654 = vpop.permute.xlu0 %653
  %v655 = vsel %vm39, %v654, 0
  %657 = vmatpush.msra.mxu0 0.0
  %658 = vmatpush.msra.mxu0 0.0
  %659 = vmatpush.msra.mxu0 0.0
  %660 = vmatpush.msra.mxu0 0.0
  %661 = vmatpush.msra.mxu0 0.0
  %662 = vmatpush.msra.mxu0 0.0
  %663 = vmatpush.msra.mxu0 0.0
  %664 = vmatpush.msra.mxu0 0.0
  %665 = vmatpush.msra.mxu0 0.0
  %666 = vmatpush.msra.mxu0 0.0
  %667 = vmatpush.msra.mxu0 0.0
  %668 = vmatpush.msra.mxu0 0.0
  %669 = vmatpush.msra.mxu0 %v108
  %670 = vmatpush.msra.mxu0 %v107
  %671 = vmatpush.msra.mxu0 %v106
  %672 = vmatpush.msra.mxu0 %v105
  %673 = vmatmul.f32.gmra.mxu0 %v655
  %v674 = vpop.f32.mrf.mxu0
  %v675 = vadd.f32 0.0, %v674
  %676 = vdwg.mxu0
  %v677 = vadd.f32 %v91, %v675
  %678 = vmatpush.msra.mxu0 0.0
  %679 = vmatpush.msra.mxu0 0.0
  %680 = vmatpush.msra.mxu0 0.0
  %681 = vmatpush.msra.mxu0 0.0
  %682 = vmatpush.msra.mxu0 0.0
  %683 = vmatpush.msra.mxu0 0.0
  %684 = vmatpush.msra.mxu0 0.0
  %685 = vmatpush.msra.mxu0 0.0
  %686 = vmatpush.msra.mxu0 0.0
  %687 = vmatpush.msra.mxu0 0.0
  %688 = vmatpush.msra.mxu0 0.0
  %689 = vmatpush.msra.mxu0 0.0
  %690 = vmatpush.msra.mxu0 %v113
  %691 = vmatpush.msra.mxu0 %v112
  %692 = vmatpush.msra.mxu0 %v111
  %693 = vmatpush.msra.mxu0 %v110
  %694 = vmatmul.f32.gmra.mxu0 %v655
  %v695 = vpop.f32.mrf.mxu0
  %v696 = vadd.f32 0.0, %v695
  %697 = vdwg.mxu0
  %699 = vrot.lane.b32.xlu0 %v696, 32
  %v700 = vpop.permute.xlu0 %699
  %v702 = vadd.f32 %v91, %v700
  %703 = vmatpush.msra.mxu0 0.0
  %704 = vmatpush.msra.mxu0 0.0
  %705 = vmatpush.msra.mxu0 0.0
  %706 = vmatpush.msra.mxu0 0.0
  %707 = vmatpush.msra.mxu0 0.0
  %708 = vmatpush.msra.mxu0 0.0
  %709 = vmatpush.msra.mxu0 0.0
  %710 = vmatpush.msra.mxu0 0.0
  %711 = vmatpush.msra.mxu0 0.0
  %712 = vmatpush.msra.mxu0 0.0
  %713 = vmatpush.msra.mxu0 0.0
  %714 = vmatpush.msra.mxu0 0.0
  %715 = vmatpush.msra.mxu0 %v118
  %716 = vmatpush.msra.mxu0 %v117
  %717 = vmatpush.msra.mxu0 %v116
  %718 = vmatpush.msra.mxu0 %v115
  %719 = vmatmul.f32.gmra.mxu0 %v655
  %v720 = vpop.f32.mrf.mxu0
  %v721 = vadd.f32 0.0, %v720
  %722 = vdwg.mxu0
  %724 = vrot.lane.b32.xlu0 %v721, 64
  %v725 = vpop.permute.xlu0 %724
  %v727 = vadd.f32 %v91, %v725
  %728 = vmatpush.msra.mxu0 0.0
  %729 = vmatpush.msra.mxu0 0.0
  %730 = vmatpush.msra.mxu0 0.0
  %731 = vmatpush.msra.mxu0 0.0
  %732 = vmatpush.msra.mxu0 0.0
  %733 = vmatpush.msra.mxu0 0.0
  %734 = vmatpush.msra.mxu0 0.0
  %735 = vmatpush.msra.mxu0 0.0
  %736 = vmatpush.msra.mxu0 0.0
  %737 = vmatpush.msra.mxu0 0.0
  %738 = vmatpush.msra.mxu0 0.0
  %739 = vmatpush.msra.mxu0 0.0
  %740 = vmatpush.msra.mxu0 %v123
  %741 = vmatpush.msra.mxu0 %v122
  %742 = vmatpush.msra.mxu0 %v121
  %743 = vmatpush.msra.mxu0 %v120
  %744 = vmatmul.f32.gmra.mxu0 %v655
  %v745 = vpop.f32.mrf.mxu0
  %v746 = vadd.f32 0.0, %v745
  %747 = vdwg.mxu0
  %749 = vrot.lane.b32.xlu0 %v746, 96
  %v750 = vpop.permute.xlu0 %749
  %v752 = vadd.f32 %v91, %v750
  %v753 = vxor.u32 %v677, 2147483648
  %v754 = vmul.f32 %v753, 1.442695
  %v755 = vpow.pop %v754
  %v756 = vadd.f32 %v755, 1.0
  %v757 = vrcp.pop %v756
  %v758 = vmul.f32 %v756, %v757
  %v759 = vsub.f32 1.0, %v758
  %v760 = vmul.f32 %v757, %v759
  %v761 = vadd.f32 %v757, %v760
  %vm762 = vweird.f32 %v756
  %vm763 = vweird.f32 %v757
  %vm764 = vmor %vm762, %vm763
  %v765 = vsel %vm764, %v757, %v761
  %v766 = vand.u32 2147483647, %v756
  %vm767 = vcmp.eq.f32.partialorder %v766, 8.507059e+37
  %v768 = vand.u32 %v756, 2147483648
  %v769 = vor.u32 1.1754944e-38, %v768
  %v770 = vsel %vm767, %v769, %v765
  %v771 = vmul.f32 1.0, %v770
  %v772 = vxor.u32 %v702, 2147483648
  %v773 = vmul.f32 %v772, 1.442695
  %v774 = vpow.pop %v773
  %v775 = vadd.f32 %v774, 1.0
  %v776 = vrcp.pop %v775
  %v777 = vmul.f32 %v775, %v776
  %v778 = vsub.f32 1.0, %v777
  %v779 = vmul.f32 %v776, %v778
  %v780 = vadd.f32 %v776, %v779
  %vm781 = vweird.f32 %v775
  %vm782 = vweird.f32 %v776
  %vm783 = vmor %vm781, %vm782
  %v784 = vsel %vm783, %v776, %v780
  %v785 = vand.u32 2147483647, %v775
  %vm786 = vcmp.eq.f32.partialorder %v785, 8.507059e+37
  %v787 = vand.u32 %v775, 2147483648
  %v788 = vor.u32 1.1754944e-38, %v787
  %v789 = vsel %vm786, %v788, %v784
  %v790 = vmul.f32 1.0, %v789
  %v791 = vtanh.pop %v727
  %v792 = vxor.u32 %v752, 2147483648
  %v793 = vmul.f32 %v792, 1.442695
  %v794 = vpow.pop %v793
  %v795 = vadd.f32 %v794, 1.0
  %v796 = vrcp.pop %v795
  %v797 = vmul.f32 %v795, %v796
  %v798 = vsub.f32 1.0, %v797
  %v799 = vmul.f32 %v796, %v798
  %v800 = vadd.f32 %v796, %v799
  %vm801 = vweird.f32 %v795
  %vm802 = vweird.f32 %v796
  %vm803 = vmor %vm801, %vm802
  %v804 = vsel %vm803, %v796, %v800
  %v805 = vand.u32 2147483647, %v795
  %vm806 = vcmp.eq.f32.partialorder %v805, 8.507059e+37
  %v807 = vand.u32 %v795, 2147483648
  %v808 = vor.u32 1.1754944e-38, %v807
  %v809 = vsel %vm806, %v808, %v804
  %v810 = vmul.f32 1.0, %v809
  %v811 = vmul.f32 %v790, %v644
  %813 = vrot.lane.b32.xlu0 %v791, 64
  %v814 = vpop.permute.xlu0 %813
  %v816 = vmul.f32 %v771, %v814
  %818 = vrot.lane.b32.xlu0 %v816, 32
  %v819 = vpop.permute.xlu0 %818
  %v821 = vadd.f32 %v811, %v819
  %v822 = vtanh.pop %v821
  %824 = vrot.lane.b32.xlu0 %v822, 64
  %v825 = vpop.permute.xlu0 %824
  %v827 = vmul.f32 %v810, %v825
  %v828 = vmax.f32 %v651, %v827
  %830 = vrot.lane.b32.xlu0 %v827, 32
  %v831 = vpop.permute.xlu0 %830
  %v832 = vsel %vm39, %v831, 0
  %834 = vmatpush.msra.mxu0 0.0
  %835 = vmatpush.msra.mxu0 0.0
  %836 = vmatpush.msra.mxu0 0.0
  %837 = vmatpush.msra.mxu0 0.0
  %838 = vmatpush.msra.mxu0 0.0
  %839 = vmatpush.msra.mxu0 0.0
  %840 = vmatpush.msra.mxu0 0.0
  %841 = vmatpush.msra.mxu0 0.0
  %842 = vmatpush.msra.mxu0 0.0
  %843 = vmatpush.msra.mxu0 0.0
  %844 = vmatpush.msra.mxu0 0.0
  %845 = vmatpush.msra.mxu0 0.0
  %846 = vmatpush.msra.mxu0 %v108
  %847 = vmatpush.msra.mxu0 %v107
  %848 = vmatpush.msra.mxu0 %v106
  %849 = vmatpush.msra.mxu0 %v105
  %850 = vmatmul.f32.gmra.mxu0 %v832
  %v851 = vpop.f32.mrf.mxu0
  %v852 = vadd.f32 0.0, %v851
  %853 = vdwg.mxu0
  %v854 = vadd.f32 %v94, %v852
  %855 = vmatpush.msra.mxu0 0.0
  %856 = vmatpush.msra.mxu0 0.0
  %857 = vmatpush.msra.mxu0 0.0
  %858 = vmatpush.msra.mxu0 0.0
  %859 = vmatpush.msra.mxu0 0.0
  %860 = vmatpush.msra.mxu0 0.0
  %861 = vmatpush.msra.mxu0 0.0
  %862 = vmatpush.msra.mxu0 0.0
  %863 = vmatpush.msra.mxu0 0.0
  %864 = vmatpush.msra.mxu0 0.0
  %865 = vmatpush.msra.mxu0 0.0
  %866 = vmatpush.msra.mxu0 0.0
  %867 = vmatpush.msra.mxu0 %v113
  %868 = vmatpush.msra.mxu0 %v112
  %869 = vmatpush.msra.mxu0 %v111
  %870 = vmatpush.msra.mxu0 %v110
  %871 = vmatmul.f32.gmra.mxu0 %v832
  %v872 = vpop.f32.mrf.mxu0
  %v873 = vadd.f32 0.0, %v872
  %874 = vdwg.mxu0
  %876 = vrot.lane.b32.xlu0 %v873, 32
  %v877 = vpop.permute.xlu0 %876
  %v879 = vadd.f32 %v94, %v877
  %880 = vmatpush.msra.mxu0 0.0
  %881 = vmatpush.msra.mxu0 0.0
  %882 = vmatpush.msra.mxu0 0.0
  %883 = vmatpush.msra.mxu0 0.0
  %884 = vmatpush.msra.mxu0 0.0
  %885 = vmatpush.msra.mxu0 0.0
  %886 = vmatpush.msra.mxu0 0.0
  %887 = vmatpush.msra.mxu0 0.0
  %888 = vmatpush.msra.mxu0 0.0
  %889 = vmatpush.msra.mxu0 0.0
  %890 = vmatpush.msra.mxu0 0.0
  %891 = vmatpush.msra.mxu0 0.0
  %892 = vmatpush.msra.mxu0 %v118
  %893 = vmatpush.msra.mxu0 %v117
  %894 = vmatpush.msra.mxu0 %v116
  %895 = vmatpush.msra.mxu0 %v115
  %896 = vmatmul.f32.gmra.mxu0 %v832
  %v897 = vpop.f32.mrf.mxu0
  %v898 = vadd.f32 0.0, %v897
  %899 = vdwg.mxu0
  %901 = vrot.lane.b32.xlu0 %v898, 64
  %v902 = vpop.permute.xlu0 %901
  %v904 = vadd.f32 %v94, %v902
  %905 = vmatpush.msra.mxu0 0.0
  %906 = vmatpush.msra.mxu0 0.0
  %907 = vmatpush.msra.mxu0 0.0
  %908 = vmatpush.msra.mxu0 0.0
  %909 = vmatpush.msra.mxu0 0.0
  %910 = vmatpush.msra.mxu0 0.0
  %911 = vmatpush.msra.mxu0 0.0
  %912 = vmatpush.msra.mxu0 0.0
  %913 = vmatpush.msra.mxu0 0.0
  %914 = vmatpush.msra.mxu0 0.0
  %915 = vmatpush.msra.mxu0 0.0
  %916 = vmatpush.msra.mxu0 0.0
  %917 = vmatpush.msra.mxu0 %v123
  %918 = vmatpush.msra.mxu0 %v122
  %919 = vmatpush.msra.mxu0 %v121
  %920 = vmatpush.msra.mxu0 %v120
  %921 = vmatmul.f32.gmra.mxu0 %v832
  %v922 = vpop.f32.mrf.mxu0
  %v923 = vadd.f32 0.0, %v922
  %924 = vdwg.mxu0
  %926 = vrot.lane.b32.xlu0 %v923, 96
  %v927 = vpop.permute.xlu0 %926
  %v929 = vadd.f32 %v94, %v927
  %v930 = vxor.u32 %v854, 2147483648
  %v931 = vmul.f32 %v930, 1.442695
  %v932 = vpow.pop %v931
  %v933 = vadd.f32 %v932, 1.0
  %v934 = vrcp.pop %v933
  %v935 = vmul.f32 %v933, %v934
  %v936 = vsub.f32 1.0, %v935
  %v937 = vmul.f32 %v934, %v936
  %v938 = vadd.f32 %v934, %v937
  %vm939 = vweird.f32 %v933
  %vm940 = vweird.f32 %v934
  %vm941 = vmor %vm939, %vm940
  %v942 = vsel %vm941, %v934, %v938
  %v943 = vand.u32 2147483647, %v933
  %vm944 = vcmp.eq.f32.partialorder %v943, 8.507059e+37
  %v945 = vand.u32 %v933, 2147483648
  %v946 = vor.u32 1.1754944e-38, %v945
  %v947 = vsel %vm944, %v946, %v942
  %v948 = vmul.f32 1.0, %v947
  %v949 = vxor.u32 %v879, 2147483648
  %v950 = vmul.f32 %v949, 1.442695
  %v951 = vpow.pop %v950
  %v952 = vadd.f32 %v951, 1.0
  %v953 = vrcp.pop %v952
  %v954 = vmul.f32 %v952, %v953
  %v955 = vsub.f32 1.0, %v954
  %v956 = vmul.f32 %v953, %v955
  %v957 = vadd.f32 %v953, %v956
  %vm958 = vweird.f32 %v952
  %vm959 = vweird.f32 %v953
  %vm960 = vmor %vm958, %vm959
  %v961 = vsel %vm960, %v953, %v957
  %v962 = vand.u32 2147483647, %v952
  %vm963 = vcmp.eq.f32.partialorder %v962, 8.507059e+37
  %v964 = vand.u32 %v952, 2147483648
  %v965 = vor.u32 1.1754944e-38, %v964
  %v966 = vsel %vm963, %v965, %v961
  %v967 = vmul.f32 1.0, %v966
  %v968 = vtanh.pop %v904
  %v969 = vxor.u32 %v929, 2147483648
  %v970 = vmul.f32 %v969, 1.442695
  %v971 = vpow.pop %v970
  %v972 = vadd.f32 %v971, 1.0
  %v973 = vrcp.pop %v972
  %v974 = vmul.f32 %v972, %v973
  %v975 = vsub.f32 1.0, %v974
  %v976 = vmul.f32 %v973, %v975
  %v977 = vadd.f32 %v973, %v976
  %vm978 = vweird.f32 %v972
  %vm979 = vweird.f32 %v973
  %vm980 = vmor %vm978, %vm979
  %v981 = vsel %vm980, %v973, %v977
  %v982 = vand.u32 2147483647, %v972
  %vm983 = vcmp.eq.f32.partialorder %v982, 8.507059e+37
  %v984 = vand.u32 %v972, 2147483648
  %v985 = vor.u32 1.1754944e-38, %v984
  %v986 = vsel %vm983, %v985, %v981
  %v987 = vmul.f32 1.0, %v986
  %v988 = vmul.f32 %v967, %v821
  %990 = vrot.lane.b32.xlu0 %v968, 64
  %v991 = vpop.permute.xlu0 %990
  %v993 = vmul.f32 %v948, %v991
  %995 = vrot.lane.b32.xlu0 %v993, 32
  %v996 = vpop.permute.xlu0 %995
  %v998 = vadd.f32 %v988, %v996
  %v999 = vtanh.pop %v998
  %1001 = vrot.lane.b32.xlu0 %v999, 64
  %v1002 = vpop.permute.xlu0 %1001
  %v1004 = vmul.f32 %v987, %v1002
  %v1005 = vmax.f32 %v828, %v1004
  %1007 = vrot.lane.b32.xlu0 %v1004, 32
  %v1008 = vpop.permute.xlu0 %1007
  %v1009 = vsel %vm39, %v1008, 0
  %1011 = vmatpush.msra.mxu0 0.0
  %1012 = vmatpush.msra.mxu0 0.0
  %1013 = vmatpush.msra.mxu0 0.0
  %1014 = vmatpush.msra.mxu0 0.0
  %1015 = vmatpush.msra.mxu0 0.0
  %1016 = vmatpush.msra.mxu0 0.0
  %1017 = vmatpush.msra.mxu0 0.0
  %1018 = vmatpush.msra.mxu0 0.0
  %1019 = vmatpush.msra.mxu0 0.0
  %1020 = vmatpush.msra.mxu0 0.0
  %1021 = vmatpush.msra.mxu0 0.0
  %1022 = vmatpush.msra.mxu0 0.0
  %1023 = vmatpush.msra.mxu0 %v108
  %1024 = vmatpush.msra.mxu0 %v107
  %1025 = vmatpush.msra.mxu0 %v106
  %1026 = vmatpush.msra.mxu0 %v105
  %1027 = vmatmul.f32.gmra.mxu0 %v1009
  %v1028 = vpop.f32.mrf.mxu0
  %v1029 = vadd.f32 0.0, %v1028
  %1030 = vdwg.mxu0
  %v1031 = vadd.f32 %v97, %v1029
  %1032 = vmatpush.msra.mxu0 0.0
  %1033 = vmatpush.msra.mxu0 0.0
  %1034 = vmatpush.msra.mxu0 0.0
  %1035 = vmatpush.msra.mxu0 0.0
  %1036 = vmatpush.msra.mxu0 0.0
  %1037 = vmatpush.msra.mxu0 0.0
  %1038 = vmatpush.msra.mxu0 0.0
  %1039 = vmatpush.msra.mxu0 0.0
  %1040 = vmatpush.msra.mxu0 0.0
  %1041 = vmatpush.msra.mxu0 0.0
  %1042 = vmatpush.msra.mxu0 0.0
  %1043 = vmatpush.msra.mxu0 0.0
  %1044 = vmatpush.msra.mxu0 %v113
  %1045 = vmatpush.msra.mxu0 %v112
  %1046 = vmatpush.msra.mxu0 %v111
  %1047 = vmatpush.msra.mxu0 %v110
  %1048 = vmatmul.f32.gmra.mxu0 %v1009
  %v1049 = vpop.f32.mrf.mxu0
  %v1050 = vadd.f32 0.0, %v1049
  %1051 = vdwg.mxu0
  %1053 = vrot.lane.b32.xlu0 %v1050, 32
  %v1054 = vpop.permute.xlu0 %1053
  %v1056 = vadd.f32 %v97, %v1054
  %1057 = vmatpush.msra.mxu0 0.0
  %1058 = vmatpush.msra.mxu0 0.0
  %1059 = vmatpush.msra.mxu0 0.0
  %1060 = vmatpush.msra.mxu0 0.0
  %1061 = vmatpush.msra.mxu0 0.0
  %1062 = vmatpush.msra.mxu0 0.0
  %1063 = vmatpush.msra.mxu0 0.0
  %1064 = vmatpush.msra.mxu0 0.0
  %1065 = vmatpush.msra.mxu0 0.0
  %1066 = vmatpush.msra.mxu0 0.0
  %1067 = vmatpush.msra.mxu0 0.0
  %1068 = vmatpush.msra.mxu0 0.0
  %1069 = vmatpush.msra.mxu0 %v118
  %1070 = vmatpush.msra.mxu0 %v117
  %1071 = vmatpush.msra.mxu0 %v116
  %1072 = vmatpush.msra.mxu0 %v115
  %1073 = vmatmul.f32.gmra.mxu0 %v1009
  %v1074 = vpop.f32.mrf.mxu0
  %v1075 = vadd.f32 0.0, %v1074
  %1076 = vdwg.mxu0
  %1078 = vrot.lane.b32.xlu0 %v1075, 64
  %v1079 = vpop.permute.xlu0 %1078
  %v1081 = vadd.f32 %v97, %v1079
  %1082 = vmatpush.msra.mxu0 0.0
  %1083 = vmatpush.msra.mxu0 0.0
  %1084 = vmatpush.msra.mxu0 0.0
  %1085 = vmatpush.msra.mxu0 0.0
  %1086 = vmatpush.msra.mxu0 0.0
  %1087 = vmatpush.msra.mxu0 0.0
  %1088 = vmatpush.msra.mxu0 0.0
  %1089 = vmatpush.msra.mxu0 0.0
  %1090 = vmatpush.msra.mxu0 0.0
  %1091 = vmatpush.msra.mxu0 0.0
  %1092 = vmatpush.msra.mxu0 0.0
  %1093 = vmatpush.msra.mxu0 0.0
  %1094 = vmatpush.msra.mxu0 %v123
  %1095 = vmatpush.msra.mxu0 %v122
  %1096 = vmatpush.msra.mxu0 %v121
  %1097 = vmatpush.msra.mxu0 %v120
  %1098 = vmatmul.f32.gmra.mxu0 %v1009
  %v1099 = vpop.f32.mrf.mxu0
  %v1100 = vadd.f32 0.0, %v1099
  %1101 = vdwg.mxu0
  %1103 = vrot.lane.b32.xlu0 %v1100, 96
  %v1104 = vpop.permute.xlu0 %1103
  %v1106 = vadd.f32 %v97, %v1104
  %v1107 = vxor.u32 %v1031, 2147483648
  %v1108 = vmul.f32 %v1107, 1.442695
  %v1109 = vpow.pop %v1108
  %v1110 = vadd.f32 %v1109, 1.0
  %v1111 = vrcp.pop %v1110
  %v1112 = vmul.f32 %v1110, %v1111
  %v1113 = vsub.f32 1.0, %v1112
  %v1114 = vmul.f32 %v1111, %v1113
  %v1115 = vadd.f32 %v1111, %v1114
  %vm1116 = vweird.f32 %v1110
  %vm1117 = vweird.f32 %v1111
  %vm1118 = vmor %vm1116, %vm1117
  %v1119 = vsel %vm1118, %v1111, %v1115
  %v1120 = vand.u32 2147483647, %v1110
  %vm1121 = vcmp.eq.f32.partialorder %v1120, 8.507059e+37
  %v1122 = vand.u32 %v1110, 2147483648
  %v1123 = vor.u32 1.1754944e-38, %v1122
  %v1124 = vsel %vm1121, %v1123, %v1119
  %v1125 = vmul.f32 1.0, %v1124
  %v1126 = vxor.u32 %v1056, 2147483648
  %v1127 = vmul.f32 %v1126, 1.442695
  %v1128 = vpow.pop %v1127
  %v1129 = vadd.f32 %v1128, 1.0
  %v1130 = vrcp.pop %v1129
  %v1131 = vmul.f32 %v1129, %v1130
  %v1132 = vsub.f32 1.0, %v1131
  %v1133 = vmul.f32 %v1130, %v1132
  %v1134 = vadd.f32 %v1130, %v1133
  %vm1135 = vweird.f32 %v1129
  %vm1136 = vweird.f32 %v1130
  %vm1137 = vmor %vm1135, %vm1136
  %v1138 = vsel %vm1137, %v1130, %v1134
  %v1139 = vand.u32 2147483647, %v1129
  %vm1140 = vcmp.eq.f32.partialorder %v1139, 8.507059e+37
  %v1141 = vand.u32 %v1129, 2147483648
  %v1142 = vor.u32 1.1754944e-38, %v1141
  %v1143 = vsel %vm1140, %v1142, %v1138
  %v1144 = vmul.f32 1.0, %v1143
  %v1145 = vtanh.pop %v1081
  %v1146 = vxor.u32 %v1106, 2147483648
  %v1147 = vmul.f32 %v1146, 1.442695
  %v1148 = vpow.pop %v1147
  %v1149 = vadd.f32 %v1148, 1.0
  %v1150 = vrcp.pop %v1149
  %v1151 = vmul.f32 %v1149, %v1150
  %v1152 = vsub.f32 1.0, %v1151
  %v1153 = vmul.f32 %v1150, %v1152
  %v1154 = vadd.f32 %v1150, %v1153
  %vm1155 = vweird.f32 %v1149
  %vm1156 = vweird.f32 %v1150
  %vm1157 = vmor %vm1155, %vm1156
  %v1158 = vsel %vm1157, %v1150, %v1154
  %v1159 = vand.u32 2147483647, %v1149
  %vm1160 = vcmp.eq.f32.partialorder %v1159, 8.507059e+37
  %v1161 = vand.u32 %v1149, 2147483648
  %v1162 = vor.u32 1.1754944e-38, %v1161
  %v1163 = vsel %vm1160, %v1162, %v1158
  %v1164 = vmul.f32 1.0, %v1163
  %v1165 = vmul.f32 %v1144, %v998
  %1167 = vrot.lane.b32.xlu0 %v1145, 64
  %v1168 = vpop.permute.xlu0 %1167
  %v1170 = vmul.f32 %v1125, %v1168
  %1172 = vrot.lane.b32.xlu0 %v1170, 32
  %v1173 = vpop.permute.xlu0 %1172
  %v1175 = vadd.f32 %v1165, %v1173
  %v1176 = vtanh.pop %v1175
  %1178 = vrot.lane.b32.xlu0 %v1176, 64
  %v1179 = vpop.permute.xlu0 %1178
  %v1181 = vmul.f32 %v1164, %v1179
  %v1182 = vmax.f32 %v1005, %v1181
  %1184 = vrot.lane.b32.xlu0 %v1181, 32
  %v1185 = vpop.permute.xlu0 %1184
  %v1186 = vsel %vm39, %v1185, 0
  %1188 = vmatpush.msra.mxu0 0.0
  %1189 = vmatpush.msra.mxu0 0.0
  %1190 = vmatpush.msra.mxu0 0.0
  %1191 = vmatpush.msra.mxu0 0.0
  %1192 = vmatpush.msra.mxu0 0.0
  %1193 = vmatpush.msra.mxu0 0.0
  %1194 = vmatpush.msra.mxu0 0.0
  %1195 = vmatpush.msra.mxu0 0.0
  %1196 = vmatpush.msra.mxu0 0.0
  %1197 = vmatpush.msra.mxu0 0.0
  %1198 = vmatpush.msra.mxu0 0.0
  %1199 = vmatpush.msra.mxu0 0.0
  %1200 = vmatpush.msra.mxu0 %v108
  %1201 = vmatpush.msra.mxu0 %v107
  %1202 = vmatpush.msra.mxu0 %v106
  %1203 = vmatpush.msra.mxu0 %v105
  %1204 = vmatmul.f32.gmra.mxu0 %v1186
  %v1205 = vpop.f32.mrf.mxu0
  %v1206 = vadd.f32 0.0, %v1205
  %1207 = vdwg.mxu0
  %v1208 = vadd.f32 %v100, %v1206
  %1209 = vmatpush.msra.mxu0 0.0
  %1210 = vmatpush.msra.mxu0 0.0
  %1211 = vmatpush.msra.mxu0 0.0
  %1212 = vmatpush.msra.mxu0 0.0
  %1213 = vmatpush.msra.mxu0 0.0
  %1214 = vmatpush.msra.mxu0 0.0
  %1215 = vmatpush.msra.mxu0 0.0
  %1216 = vmatpush.msra.mxu0 0.0
  %1217 = vmatpush.msra.mxu0 0.0
  %1218 = vmatpush.msra.mxu0 0.0
  %1219 = vmatpush.msra.mxu0 0.0
  %1220 = vmatpush.msra.mxu0 0.0
  %1221 = vmatpush.msra.mxu0 %v113
  %1222 = vmatpush.msra.mxu0 %v112
  %1223 = vmatpush.msra.mxu0 %v111
  %1224 = vmatpush.msra.mxu0 %v110
  %1225 = vmatmul.f32.gmra.mxu0 %v1186
  %v1226 = vpop.f32.mrf.mxu0
  %v1227 = vadd.f32 0.0, %v1226
  %1228 = vdwg.mxu0
  %1230 = vrot.lane.b32.xlu0 %v1227, 32
  %v1231 = vpop.permute.xlu0 %1230
  %v1233 = vadd.f32 %v100, %v1231
  %1234 = vmatpush.msra.mxu0 0.0
  %1235 = vmatpush.msra.mxu0 0.0
  %1236 = vmatpush.msra.mxu0 0.0
  %1237 = vmatpush.msra.mxu0 0.0
  %1238 = vmatpush.msra.mxu0 0.0
  %1239 = vmatpush.msra.mxu0 0.0
  %1240 = vmatpush.msra.mxu0 0.0
  %1241 = vmatpush.msra.mxu0 0.0
  %1242 = vmatpush.msra.mxu0 0.0
  %1243 = vmatpush.msra.mxu0 0.0
  %1244 = vmatpush.msra.mxu0 0.0
  %1245 = vmatpush.msra.mxu0 0.0
  %1246 = vmatpush.msra.mxu0 %v118
  %1247 = vmatpush.msra.mxu0 %v117
  %1248 = vmatpush.msra.mxu0 %v116
  %1249 = vmatpush.msra.mxu0 %v115
  %1250 = vmatmul.f32.gmra.mxu0 %v1186
  %v1251 = vpop.f32.mrf.mxu0
  %v1252 = vadd.f32 0.0, %v1251
  %1253 = vdwg.mxu0
  %1255 = vrot.lane.b32.xlu0 %v1252, 64
  %v1256 = vpop.permute.xlu0 %1255
  %v1258 = vadd.f32 %v100, %v1256
  %1259 = vmatpush.msra.mxu0 0.0
  %1260 = vmatpush.msra.mxu0 0.0
  %1261 = vmatpush.msra.mxu0 0.0
  %1262 = vmatpush.msra.mxu0 0.0
  %1263 = vmatpush.msra.mxu0 0.0
  %1264 = vmatpush.msra.mxu0 0.0
  %1265 = vmatpush.msra.mxu0 0.0
  %1266 = vmatpush.msra.mxu0 0.0
  %1267 = vmatpush.msra.mxu0 0.0
  %1268 = vmatpush.msra.mxu0 0.0
  %1269 = vmatpush.msra.mxu0 0.0
  %1270 = vmatpush.msra.mxu0 0.0
  %1271 = vmatpush.msra.mxu0 %v123
  %1272 = vmatpush.msra.mxu0 %v122
  %1273 = vmatpush.msra.mxu0 %v121
  %1274 = vmatpush.msra.mxu0 %v120
  %1275 = vmatmul.f32.gmra.mxu0 %v1186
  %v1276 = vpop.f32.mrf.mxu0
  %v1277 = vadd.f32 0.0, %v1276
  %1278 = vdwg.mxu0
  %1280 = vrot.lane.b32.xlu0 %v1277, 96
  %v1281 = vpop.permute.xlu0 %1280
  %v1283 = vadd.f32 %v100, %v1281
  %v1284 = vxor.u32 %v1208, 2147483648
  %v1285 = vmul.f32 %v1284, 1.442695
  %v1286 = vpow.pop %v1285
  %v1287 = vadd.f32 %v1286, 1.0
  %v1288 = vrcp.pop %v1287
  %v1289 = vmul.f32 %v1287, %v1288
  %v1290 = vsub.f32 1.0, %v1289
  %v1291 = vmul.f32 %v1288, %v1290
  %v1292 = vadd.f32 %v1288, %v1291
  %vm1293 = vweird.f32 %v1287
  %vm1294 = vweird.f32 %v1288
  %vm1295 = vmor %vm1293, %vm1294
  %v1296 = vsel %vm1295, %v1288, %v1292
  %v1297 = vand.u32 2147483647, %v1287
  %vm1298 = vcmp.eq.f32.partialorder %v1297, 8.507059e+37
  %v1299 = vand.u32 %v1287, 2147483648
  %v1300 = vor.u32 1.1754944e-38, %v1299
  %v1301 = vsel %vm1298, %v1300, %v1296
  %v1302 = vmul.f32 1.0, %v1301
  %v1303 = vxor.u32 %v1233, 2147483648
  %v1304 = vmul.f32 %v1303, 1.442695
  %v1305 = vpow.pop %v1304
  %v1306 = vadd.f32 %v1305, 1.0
  %v1307 = vrcp.pop %v1306
  %v1308 = vmul.f32 %v1306, %v1307
  %v1309 = vsub.f32 1.0, %v1308
  %v1310 = vmul.f32 %v1307, %v1309
  %v1311 = vadd.f32 %v1307, %v1310
  %vm1312 = vweird.f32 %v1306
  %vm1313 = vweird.f32 %v1307
  %vm1314 = vmor %vm1312, %vm1313
  %v1315 = vsel %vm1314, %v1307, %v1311
  %v1316 = vand.u32 2147483647, %v1306
  %vm1317 = vcmp.eq.f32.partialorder %v1316, 8.507059e+37
  %v1318 = vand.u32 %v1306, 2147483648
  %v1319 = vor.u32 1.1754944e-38, %v1318
  %v1320 = vsel %vm1317, %v1319, %v1315
  %v1321 = vmul.f32 1.0, %v1320
  %v1322 = vtanh.pop %v1258
  %v1323 = vxor.u32 %v1283, 2147483648
  %v1324 = vmul.f32 %v1323, 1.442695
  %v1325 = vpow.pop %v1324
  %v1326 = vadd.f32 %v1325, 1.0
  %v1327 = vrcp.pop %v1326
  %v1328 = vmul.f32 %v1326, %v1327
  %v1329 = vsub.f32 1.0, %v1328
  %v1330 = vmul.f32 %v1327, %v1329
  %v1331 = vadd.f32 %v1327, %v1330
  %vm1332 = vweird.f32 %v1326
  %vm1333 = vweird.f32 %v1327
  %vm1334 = vmor %vm1332, %vm1333
  %v1335 = vsel %vm1334, %v1327, %v1331
  %v1336 = vand.u32 2147483647, %v1326
  %vm1337 = vcmp.eq.f32.partialorder %v1336, 8.507059e+37
  %v1338 = vand.u32 %v1326, 2147483648
  %v1339 = vor.u32 1.1754944e-38, %v1338
  %v1340 = vsel %vm1337, %v1339, %v1335
  %v1341 = vmul.f32 1.0, %v1340
  %v1342 = vmul.f32 %v1321, %v1175
  %1344 = vrot.lane.b32.xlu0 %v1322, 64
  %v1345 = vpop.permute.xlu0 %1344
  %v1347 = vmul.f32 %v1302, %v1345
  %1349 = vrot.lane.b32.xlu0 %v1347, 32
  %v1350 = vpop.permute.xlu0 %1349
  %v1352 = vadd.f32 %v1342, %v1350
  %v1353 = vtanh.pop %v1352
  %1355 = vrot.lane.b32.xlu0 %v1353, 64
  %v1356 = vpop.permute.xlu0 %1355
  %v1358 = vmul.f32 %v1341, %v1356
  %v1359 = vmax.f32 %v1182, %v1358
  %1361 = vrot.lane.b32.xlu0 %v1358, 32
  %v1362 = vpop.permute.xlu0 %1361
  %v1363 = vsel %vm39, %v1362, 0
  %1365 = vmatpush.msra.mxu0 0.0
  %1366 = vmatpush.msra.mxu0 0.0
  %1367 = vmatpush.msra.mxu0 0.0
  %1368 = vmatpush.msra.mxu0 0.0
  %1369 = vmatpush.msra.mxu0 0.0
  %1370 = vmatpush.msra.mxu0 0.0
  %1371 = vmatpush.msra.mxu0 0.0
  %1372 = vmatpush.msra.mxu0 0.0
  %1373 = vmatpush.msra.mxu0 0.0
  %1374 = vmatpush.msra.mxu0 0.0
  %1375 = vmatpush.msra.mxu0 0.0
  %1376 = vmatpush.msra.mxu0 0.0
  %1377 = vmatpush.msra.mxu0 %v108
  %1378 = vmatpush.msra.mxu0 %v107
  %1379 = vmatpush.msra.mxu0 %v106
  %1380 = vmatpush.msra.mxu0 %v105
  %1381 = vmatmul.f32.gmra.mxu0 %v1363
  %v1382 = vpop.f32.mrf.mxu0
  %v1383 = vadd.f32 0.0, %v1382
  %1384 = vdwg.mxu0
  %v1385 = vadd.f32 %v103, %v1383
  %1386 = vmatpush.msra.mxu0 0.0
  %1387 = vmatpush.msra.mxu0 0.0
  %1388 = vmatpush.msra.mxu0 0.0
  %1389 = vmatpush.msra.mxu0 0.0
  %1390 = vmatpush.msra.mxu0 0.0
  %1391 = vmatpush.msra.mxu0 0.0
  %1392 = vmatpush.msra.mxu0 0.0
  %1393 = vmatpush.msra.mxu0 0.0
  %1394 = vmatpush.msra.mxu0 0.0
  %1395 = vmatpush.msra.mxu0 0.0
  %1396 = vmatpush.msra.mxu0 0.0
  %1397 = vmatpush.msra.mxu0 0.0
  %1398 = vmatpush.msra.mxu0 %v113
  %1399 = vmatpush.msra.mxu0 %v112
  %1400 = vmatpush.msra.mxu0 %v111
  %1401 = vmatpush.msra.mxu0 %v110
  %1402 = vmatmul.f32.gmra.mxu0 %v1363
  %v1403 = vpop.f32.mrf.mxu0
  %v1404 = vadd.f32 0.0, %v1403
  %1405 = vdwg.mxu0
  %1407 = vrot.lane.b32.xlu0 %v1404, 32
  %v1408 = vpop.permute.xlu0 %1407
  %v1410 = vadd.f32 %v103, %v1408
  %1411 = vmatpush.msra.mxu0 0.0
  %1412 = vmatpush.msra.mxu0 0.0
  %1413 = vmatpush.msra.mxu0 0.0
  %1414 = vmatpush.msra.mxu0 0.0
  %1415 = vmatpush.msra.mxu0 0.0
  %1416 = vmatpush.msra.mxu0 0.0
  %1417 = vmatpush.msra.mxu0 0.0
  %1418 = vmatpush.msra.mxu0 0.0
  %1419 = vmatpush.msra.mxu0 0.0
  %1420 = vmatpush.msra.mxu0 0.0
  %1421 = vmatpush.msra.mxu0 0.0
  %1422 = vmatpush.msra.mxu0 0.0
  %1423 = vmatpush.msra.mxu0 %v118
  %1424 = vmatpush.msra.mxu0 %v117
  %1425 = vmatpush.msra.mxu0 %v116
  %1426 = vmatpush.msra.mxu0 %v115
  %1427 = vmatmul.f32.gmra.mxu0 %v1363
  %v1428 = vpop.f32.mrf.mxu0
  %v1429 = vadd.f32 0.0, %v1428
  %1430 = vdwg.mxu0
  %1432 = vrot.lane.b32.xlu0 %v1429, 64
  %v1433 = vpop.permute.xlu0 %1432
  %v1435 = vadd.f32 %v103, %v1433
  %1436 = vmatpush.msra.mxu0 0.0
  %1437 = vmatpush.msra.mxu0 0.0
  %1438 = vmatpush.msra.mxu0 0.0
  %1439 = vmatpush.msra.mxu0 0.0
  %1440 = vmatpush.msra.mxu0 0.0
  %1441 = vmatpush.msra.mxu0 0.0
  %1442 = vmatpush.msra.mxu0 0.0
  %1443 = vmatpush.msra.mxu0 0.0
  %1444 = vmatpush.msra.mxu0 0.0
  %1445 = vmatpush.msra.mxu0 0.0
  %1446 = vmatpush.msra.mxu0 0.0
  %1447 = vmatpush.msra.mxu0 0.0
  %1448 = vmatpush.msra.mxu0 %v123
  %1449 = vmatpush.msra.mxu0 %v122
  %1450 = vmatpush.msra.mxu0 %v121
  %1451 = vmatpush.msra.mxu0 %v120
  %1452 = vmatmul.f32.gmra.mxu0 %v1363
  %v1453 = vpop.f32.mrf.mxu0
  %v1454 = vadd.f32 0.0, %v1453
  %1455 = vdwg.mxu0
  %1457 = vrot.lane.b32.xlu0 %v1454, 96
  %v1458 = vpop.permute.xlu0 %1457
  %v1460 = vadd.f32 %v103, %v1458
  %v1461 = vxor.u32 %v1385, 2147483648
  %v1462 = vmul.f32 %v1461, 1.442695
  %v1463 = vpow.pop %v1462
  %v1464 = vadd.f32 %v1463, 1.0
  %v1465 = vrcp.pop %v1464
  %v1466 = vmul.f32 %v1464, %v1465
  %v1467 = vsub.f32 1.0, %v1466
  %v1468 = vmul.f32 %v1465, %v1467
  %v1469 = vadd.f32 %v1465, %v1468
  %vm1470 = vweird.f32 %v1464
  %vm1471 = vweird.f32 %v1465
  %vm1472 = vmor %vm1470, %vm1471
  %v1473 = vsel %vm1472, %v1465, %v1469
  %v1474 = vand.u32 2147483647, %v1464
  %vm1475 = vcmp.eq.f32.partialorder %v1474, 8.507059e+37
  %v1476 = vand.u32 %v1464, 2147483648
  %v1477 = vor.u32 1.1754944e-38, %v1476
  %v1478 = vsel %vm1475, %v1477, %v1473
  %v1479 = vmul.f32 1.0, %v1478
  %v1480 = vxor.u32 %v1410, 2147483648
  %v1481 = vmul.f32 %v1480, 1.442695
  %v1482 = vpow.pop %v1481
  %v1483 = vadd.f32 %v1482, 1.0
  %v1484 = vrcp.pop %v1483
  %v1485 = vmul.f32 %v1483, %v1484
  %v1486 = vsub.f32 1.0, %v1485
  %v1487 = vmul.f32 %v1484, %v1486
  %v1488 = vadd.f32 %v1484, %v1487
  %vm1489 = vweird.f32 %v1483
  %vm1490 = vweird.f32 %v1484
  %vm1491 = vmor %vm1489, %vm1490
  %v1492 = vsel %vm1491, %v1484, %v1488
  %v1493 = vand.u32 2147483647, %v1483
  %vm1494 = vcmp.eq.f32.partialorder %v1493, 8.507059e+37
  %v1495 = vand.u32 %v1483, 2147483648
  %v1496 = vor.u32 1.1754944e-38, %v1495
  %v1497 = vsel %vm1494, %v1496, %v1492
  %v1498 = vmul.f32 1.0, %v1497
  %v1499 = vtanh.pop %v1435
  %v1500 = vxor.u32 %v1460, 2147483648
  %v1501 = vmul.f32 %v1500, 1.442695
  %v1502 = vpow.pop %v1501
  %v1503 = vadd.f32 %v1502, 1.0
  %v1504 = vrcp.pop %v1503
  %v1505 = vmul.f32 %v1503, %v1504
  %v1506 = vsub.f32 1.0, %v1505
  %v1507 = vmul.f32 %v1504, %v1506
  %v1508 = vadd.f32 %v1504, %v1507
  %vm1509 = vweird.f32 %v1503
  %vm1510 = vweird.f32 %v1504
  %vm1511 = vmor %vm1509, %vm1510
  %v1512 = vsel %vm1511, %v1504, %v1508
  %v1513 = vand.u32 2147483647, %v1503
  %vm1514 = vcmp.eq.f32.partialorder %v1513, 8.507059e+37
  %v1515 = vand.u32 %v1503, 2147483648
  %v1516 = vor.u32 1.1754944e-38, %v1515
  %v1517 = vsel %vm1514, %v1516, %v1512
  %v1518 = vmul.f32 1.0, %v1517
  %v1519 = vmul.f32 %v1498, %v1352
  %1521 = vrot.lane.b32.xlu0 %v1499, 64
  %v1522 = vpop.permute.xlu0 %1521
  %v1524 = vmul.f32 %v1479, %v1522
  %1526 = vrot.lane.b32.xlu0 %v1524, 32
  %v1527 = vpop.permute.xlu0 %1526
  %v1529 = vadd.f32 %v1519, %v1527
  %v1530 = vtanh.pop %v1529
  %1532 = vrot.lane.b32.xlu0 %v1530, 64
  %v1533 = vpop.permute.xlu0 %1532
  %v1535 = vmul.f32 %v1518, %v1533
  %v1536 = vmax.f32 %v1359, %v1535
  %v1537 = vld [vmem:[%s4] sm:$0xff]
  %v1538 = vld [vmem:[%s4 + $0x8] sm:$0xff]
  %v1539 = vld [vmem:[%s4 + $0x10] sm:$0xff]
  %v1540 = vld [vmem:[%s4 + $0x18] sm:$0xff]
  %v1541 = vld [vmem:[%s5] sm:$0x1]
  %v1543 = vperm.slane %v1541, 0
  %1546 = vrot.lane.b32.xlu0 %v1536, 32
  %v1547 = vpop.permute.xlu0 %1546
  %v1548 = vsel %vm39, %v1547, 0
  %1550 = vmatpush.msra.mxu0 0.0
  %1551 = vmatpush.msra.mxu0 0.0
  %1552 = vmatpush.msra.mxu0 0.0
  %1553 = vmatpush.msra.mxu0 0.0
  %1554 = vmatpush.msra.mxu0 0.0
  %1555 = vmatpush.msra.mxu0 0.0
  %1556 = vmatpush.msra.mxu0 0.0
  %1557 = vmatpush.msra.mxu0 0.0
  %1558 = vmatpush.msra.mxu0 0.0
  %1559 = vmatpush.msra.mxu0 0.0
  %1560 = vmatpush.msra.mxu0 0.0
  %1561 = vmatpush.msra.mxu0 0.0
  %1562 = vmatpush.msra.mxu0 %v1540
  %1563 = vmatpush.msra.mxu0 %v1539
  %1564 = vmatpush.msra.mxu0 %v1538
  %1565 = vmatpush.msra.mxu0 %v1537
  %1566 = vmatmul.f32.gmra.mxu0 %v1548
  %v1567 = vpop.f32.mrf.mxu0
  %v1568 = vadd.f32 %v1543, %v1567
  %1569 = vdwg.mxu0
  %vm1570 = vcmask 64512
  %1571 = vst.msk [vmem:[%s6] sm:$0xff] %vm1570, %v1568
  // Predicated region
  $region26: #{generate_forward.1} parent=0 // pred_check
    _
  $region27: #{generate_forward.1} parent=0 // pred_check_branch
    %1573 = sbr.rel (0) target = $region29
  $region28: #{generate_forward.1} parent=0 // pred_region
    _
  $region29: #{generate_forward.1} parent=0 // pred_fallthru
    _
  // Predicated region
  $region30: #{generate_forward.1} parent=0 // pred_check
    _
  $region31: #{generate_forward.1} parent=0 // pred_check_branch
    %1575 = sbr.rel (0) target = $region33
  $region32: #{generate_forward.1} parent=0 // pred_region
    _
  $region33: #{generate_forward.1} parent=0 // pred_fallthru
    _

</llo_original>
